<compile_context>
chip_gen: v7x
topology: tpu7x:2x2x1
jax: 0.10.0
libtpu: 0.0.40
codegen_flags: <defaults>
</compile_context>

<pallas_src>
import functools

import jax
import jax.numpy as jnp
from jax.experimental import pallas as pl
from jax.experimental.pallas import tpu as pltpu


# ----------------------------- Pallas kernels ------------------------------ #

def _project_conv_kernel(wg_ref, logit_ref, conv_ref, s1_ref, s2_ref, *,
                         n_nodes, tile_s, s_total, use_fma):
    """One (batch, spatial-tile) grid point.

    wg_ref:    (O, N)   conv_w @ graph[b]^T  (precomputed, tiny)
    logit_ref: (N, tS)  node logits for this spatial tile (native dtype)
    conv_ref:  (O, tS)  1x1 conv output (softmax-normalized), bf16
    s1_ref:    (O, 1)   per-tile per-channel sum          (BN partial stats)
    s2_ref:    (O, 1)   per-tile per-channel sum-of-squares
    """
    s_idx = pl.program_id(1)

    # Softmax over the node axis (PyTorch softmax(dim=1)); normalization is
    # deferred to after the projection (O rows to scale instead of N).
    logit = logit_ref[...].astype(jnp.float32)                  # (N, tS)
    m = jnp.max(logit, axis=0, keepdims=True)                   # (1, tS)
    e = jnp.exp(logit - m)                                      # (N, tS)
    colsum = jnp.sum(e, axis=0, keepdims=True)                  # (1, tS), >= 1
    inv = pl.reciprocal(colsum, approx=True)                    # EUP, ~free

    if use_fma:
        # (O,N)@(N,tS) with tiny N/O: unrolled VPU broadcast-FMAs; the VALU
        # has slack (exp/DMA dominate) and the MXU stays off the critical path.
        wg = wg_ref[...]                                        # (O, N) f32
        conv = wg[:, 0:1] * e[0:1, :]
        for n in range(1, n_nodes):
            conv = conv + wg[:, n:n + 1] * e[n:n + 1, :]
        conv = conv * inv                                       # (O, tS)
    else:
        conv = jnp.dot(wg_ref[...], e,
                       preferred_element_type=jnp.float32) * inv

    # bf16 intermediate: halves the conv HBM write and kernel-2 re-read.
    conv_ref[...] = conv.astype(conv_ref.dtype)

    # BN partial statistics from the in-register f32 conv. Exclude spatial
    # padding columns (only present when S was padded up to a multiple of tS).
    if s_total % tile_s != 0:
        col = s_idx * tile_s + jax.lax.broadcasted_iota(jnp.int32,
                                                        conv.shape, 1)
        conv_stats = jnp.where(col < s_total, conv, 0.0)
    else:
        conv_stats = conv

    s1_ref[...] = jnp.sum(conv_stats, axis=1, keepdims=True)              # (O,1)
    s2_ref[...] = jnp.sum(conv_stats * conv_stats, axis=1, keepdims=True)  # (O,1)


def _bn_apply_relu_kernel(x_ref, scale_ref, shift_ref, out_ref):
    """Pre-folded BatchNorm affine + ReLU: one FMA + max per element.

    x_ref:     (O, tS)  bf16 conv intermediate
    scale_ref: (O, 1)   gamma * rsqrt(var + eps)
    shift_ref: (O, 1)   beta  - mean * scale
    out_ref:   (O, tS)  final output (input dtype)
    """
    x = x_ref[...].astype(jnp.float32)
    y = x * scale_ref[...] + shift_ref[...]
    out_ref[...] = jnp.maximum(y, 0.0).astype(out_ref.dtype)


# ------------------------------- Wrapper ----------------------------------- #

def _round_up(x, m):
    return ((x + m - 1) // m) * m


def _pick_tile(s_pad, max_tile):
    """Largest multiple of 128 dividing s_pad, capped at max_tile.

    s_pad is always a multiple of 128, so 128 is a guaranteed fallback and
    tiles are always lane-dense (no masked partial stores)."""
    best = 128
    t = 128
    while t <= min(s_pad, max_tile):
        if s_pad % t == 0:
            best = t
        t += 128
    return best


@functools.partial(jax.jit, static_argnames=("max_tile",))
def graph_to_featuremaps(graph, fea_logit, conv_w, bn_gamma, bn_beta,
                         max_tile=8192):
    """JAX/Pallas port of My_Graph_to_Featuremaps.forward (training-mode BN).

    graph:     (B, nodes, hidden_layers)
    fea_logit: (B, nodes, H, W) or (B, nodes, D, H, W)
    conv_w:    (output_channels, hidden_layers)  -- 1x1(x1) conv, no bias
    bn_gamma:  (output_channels,)
    bn_beta:   (output_channels,)
    returns:   (B, output_channels, *spatial)    -- NCHW / NCDHW
    """
    assert fea_logit.ndim in (4, 5)
    B, N = fea_logit.shape[:2]
    spatial = fea_logit.shape[2:]
    S = 1
    for s in spatial:
        S *= s
    O = conv_w.shape[0]
    eps = 1e-5

    # Spatial axis padded to a multiple of 128 (lane-dense), then tiled.
    S_pad = _round_up(S, 128)
    tS = _pick_tile(S_pad, max_tile)
    n_s_tiles = S_pad // tS

    # Keep logits in their native dtype (bf16 inputs stay bf16 through the
    # HBM read); the kernel upcasts after the DMA.
    logit_flat = fea_logit.reshape(B, N, S)
    if S_pad != S:
        logit_flat = jnp.pad(logit_flat, ((0, 0), (0, 0), (0, S_pad - S)))

    # Re-associated matmul: WG[b] = conv_w @ graph[b]^T  -> (B, O, N). Tiny.
    wg = jnp.einsum('oh,bnh->bon', conv_w.astype(jnp.float32),
                    graph.astype(jnp.float32))

    kernel1 = functools.partial(
        _project_conv_kernel,
        n_nodes=N, tile_s=tS, s_total=S, use_fma=(N <= 16))

    # Kernel 1: softmax + projection + 1x1 conv + per-tile BN partial stats.
    conv_out, s1, s2 = pl.pallas_call(
        kernel1,
        out_shape=(
            jax.ShapeDtypeStruct((B, O, S_pad), jnp.bfloat16),
            jax.ShapeDtypeStruct((B, n_s_tiles, O, 1), jnp.float32),
            jax.ShapeDtypeStruct((B, n_s_tiles, O, 1), jnp.float32),
        ),
        grid_spec=pltpu.PrefetchScalarGridSpec(
            num_scalar_prefetch=0,
            grid=(B, n_s_tiles),
            in_specs=[
                pl.BlockSpec((None, O, N), lambda b, s: (b, 0, 0)),
                pl.BlockSpec((None, N, tS), lambda b, s: (b, 0, s)),
            ],
            out_specs=[
                pl.BlockSpec((None, O, tS), lambda b, s: (b, 0, s)),
                pl.BlockSpec((None, None, O, 1), lambda b, s: (b, s, 0, 0)),
                pl.BlockSpec((None, None, O, 1), lambda b, s: (b, s, 0, 0)),
            ],
        ),
        compiler_params=pltpu.CompilerParams(
            dimension_semantics=("parallel", "parallel")),
    )(wg, logit_flat)

    # Finalize batch statistics (tiny (B, n_tiles, O) reduction in XLA) and
    # fold the BN affine into per-channel scale/shift. Padded columns were
    # masked out of s1/s2, so the count is the true B*S.
    count = jnp.float32(B * S)
    mean = jnp.sum(s1, axis=(0, 1))[:, 0] / count               # (O,)
    msq = jnp.sum(s2, axis=(0, 1))[:, 0] / count                # (O,)
    var = jnp.maximum(msq - mean * mean, 0.0)                   # biased var
    inv_std = jax.lax.rsqrt(var + eps)
    scale = bn_gamma.astype(jnp.float32) * inv_std              # (O,)
    shift = bn_beta.astype(jnp.float32) - mean * scale          # (O,)

    out_dtype = fea_logit.dtype
    alias = {0: 0} if jnp.dtype(out_dtype) == conv_out.dtype else {}

    # Kernel 2: tiled BN-apply + ReLU (in place when dtypes allow aliasing).
    out = pl.pallas_call(
        _bn_apply_relu_kernel,
        out_shape=jax.ShapeDtypeStruct((B, O, S_pad), out_dtype),
        grid_spec=pltpu.PrefetchScalarGridSpec(
            num_scalar_prefetch=0,
            grid=(B, n_s_tiles),
            in_specs=[
                pl.BlockSpec((None, O, tS), lambda b, s: (b, 0, s)),
                pl.BlockSpec((O, 1), lambda b, s: (0, 0)),
                pl.BlockSpec((O, 1), lambda b, s: (0, 0)),
            ],
            out_specs=pl.BlockSpec((None, O, tS), lambda b, s: (b, 0, s)),
        ),
        compiler_params=pltpu.CompilerParams(
            dimension_semantics=("parallel", "parallel")),
        input_output_aliases=alias,
    )(conv_out, scale.reshape(O, 1), shift.reshape(O, 1))

    if S_pad != S:
        out = out[:, :, :S]
    return out.reshape((B, O) + spatial)


# ------------------------------ Reference ---------------------------------- #

def _reference(graph, fea_logit, conv_w, gamma, beta, eps=1e-5):
    B, N = fea_logit.shape[:2]
    spatial = fea_logit.shape[2:]
    S = 1
    for s in spatial:
        S *= s
    prob = jax.nn.softmax(fea_logit.reshape(B, N, S).astype(jnp.float32),
                          axis=1)                                # (B,N,S)
    fea = jnp.einsum('bns,bnh->bhs', prob, graph)                # (B,Hd,S)
    conv = jnp.einsum('oh,bhs->bos', conv_w, fea)                # (B,O,S)
    mu = conv.mean(axis=(0, 2), keepdims=True)
    var = ((conv - mu) ** 2).mean(axis=(0, 2), keepdims=True)
    y = (conv - mu) / jnp.sqrt(var + eps) * gamma[None, :, None] \
        + beta[None, :, None]
    y = jnp.maximum(y, 0.0)
    return y.reshape((B, conv_w.shape[0]) + spatial)


# --------------------------------- Main ------------------------------------ #

if __name__ == "__main__":
    # Module config: hidden_layers=32, output_channels=4, dimension=3
    B, NODES, HIDDEN, OUT_CH = 2, 8, 32, 4
    D, H, W = 16, 16, 16          # S = 4096 -> single lane-dense 4096 tile

    key = jax.random.PRNGKey(0)
    k_graph, k_logit, k_w = jax.random.split(key, 3)

    graph = jax.random.normal(k_graph, (B, NODES, HIDDEN), jnp.float32)
    fea_logit = jax.random.normal(k_logit, (B, NODES, D, H, W), jnp.float32)

    # Deterministic synthetic parameters (Conv3d 1x1x1 weight, BN affine).
    conv_w = jax.random.normal(k_w, (OUT_CH, HIDDEN), jnp.float32) / jnp.sqrt(
        jnp.float32(HIDDEN))
    bn_gamma = 1.0 + 0.1 * jnp.arange(OUT_CH, dtype=jnp.float32)
    bn_beta = 0.05 * jnp.arange(OUT_CH, dtype=jnp.float32) - 0.1

    out = graph_to_featuremaps(graph, fea_logit, conv_w, bn_gamma, bn_beta)
    out = jax.block_until_ready(out)

    assert out.shape == (B, OUT_CH, D, H, W), out.shape

    ref = _reference(graph, fea_logit, conv_w, bn_gamma, bn_beta)
    assert bool(jnp.allclose(out, ref, atol=5e-2, rtol=5e-2)), (
        float(jnp.max(jnp.abs(out - ref))))

    # TODO(synk): BatchNorm running_mean/running_var buffer updates (training
    # module state) are not materialized; only the forward output is produced.
    print("KERNEL_OK")
</pallas_src>

<mosaic_0001>
module attributes {stable_mosaic.version = 11 : i64} {
  func.func @_project_conv_kernel(%arg0: i32, %arg1: i32, %arg2: memref<1x4x8xf32, #tpu.memory_space<vmem>>, %arg3: memref<1x8x4096xf32, #tpu.memory_space<vmem>>, %arg4: memref<1x4x4096xbf16, #tpu.memory_space<vmem>>, %arg5: memref<1x1x4x1xf32, #tpu.memory_space<vmem>>, %arg6: memref<1x1x4x1xf32, #tpu.memory_space<vmem>>) attributes {dimension_semantics = [#tpu.dimension_semantics<parallel>, #tpu.dimension_semantics<parallel>], iteration_bounds = array<i64: 2, 1>, scalar_prefetch = 0 : i64, scratch_operands = 0 : i64, tpu.core_type = #tpu.core_type<tc>, window_params = [{transform_indices = @transform_0, window_bounds = array<i64: 1, 4, 8>}, {transform_indices = @transform_1, window_bounds = array<i64: 1, 8, 4096>}, {transform_indices = @transform_2, window_bounds = array<i64: 1, 4, 4096>}, {transform_indices = @transform_3, window_bounds = array<i64: 1, 1, 4, 1>}, {transform_indices = @transform_4, window_bounds = array<i64: 1, 1, 4, 1>}]} {
    %c0 = arith.constant 0 : index
    %c0_0 = arith.constant 0 : index
    %c0_1 = arith.constant 0 : index
    %0 = vector.load %arg3[%c0, %c0_0, %c0_1] : memref<1x8x4096xf32, #tpu.memory_space<vmem>>, vector<1x8x4096xf32>
    %1 = vector.shape_cast %0 : vector<1x8x4096xf32> to vector<8x4096xf32>
    %cst = arith.constant dense<0xFF800000> : vector<4096xf32>
    %2 = vector.multi_reduction <maximumf>, %1, %cst [0] : vector<8x4096xf32> to vector<4096xf32>
    %3 = vector.shape_cast %2 : vector<4096xf32> to vector<1x4096xf32>
    %4 = vector.broadcast %3 : vector<1x4096xf32> to vector<8x4096xf32>
    %5 = arith.subf %1, %4 : vector<8x4096xf32>
    %6 = math.exp %5 : vector<8x4096xf32>
    %cst_2 = arith.constant dense<0.000000e+00> : vector<4096xf32>
    %7 = vector.multi_reduction <add>, %6, %cst_2 [0] : vector<8x4096xf32> to vector<4096xf32>
    %8 = vector.shape_cast %7 : vector<4096xf32> to vector<1x4096xf32>
    %9 = tpu.reciprocal %8 {approx = true} : vector<1x4096xf32> -> vector<1x4096xf32>
    %c0_3 = arith.constant 0 : index
    %c0_4 = arith.constant 0 : index
    %c0_5 = arith.constant 0 : index
    %10 = vector.load %arg2[%c0_3, %c0_4, %c0_5] : memref<1x4x8xf32, #tpu.memory_space<vmem>>, vector<1x4x8xf32>
    %11 = vector.shape_cast %10 : vector<1x4x8xf32> to vector<4x8xf32>
    %12 = vector.extract_strided_slice %11 {offsets = [0, 0], sizes = [4, 1], strides = [1, 1]} : vector<4x8xf32> to vector<4x1xf32>
    %13 = vector.extract_strided_slice %6 {offsets = [0, 0], sizes = [1, 4096], strides = [1, 1]} : vector<8x4096xf32> to vector<1x4096xf32>
    %14 = vector.broadcast %12 : vector<4x1xf32> to vector<4x4096xf32>
    %15 = vector.broadcast %13 : vector<1x4096xf32> to vector<4x4096xf32>
    %16 = arith.mulf %14, %15 : vector<4x4096xf32>
    %17 = vector.extract_strided_slice %11 {offsets = [0, 1], sizes = [4, 1], strides = [1, 1]} : vector<4x8xf32> to vector<4x1xf32>
    %18 = vector.extract_strided_slice %6 {offsets = [1, 0], sizes = [1, 4096], strides = [1, 1]} : vector<8x4096xf32> to vector<1x4096xf32>
    %19 = vector.broadcast %17 : vector<4x1xf32> to vector<4x4096xf32>
    %20 = vector.broadcast %18 : vector<1x4096xf32> to vector<4x4096xf32>
    %21 = arith.mulf %19, %20 : vector<4x4096xf32>
    %22 = arith.addf %16, %21 : vector<4x4096xf32>
    %23 = vector.extract_strided_slice %11 {offsets = [0, 2], sizes = [4, 1], strides = [1, 1]} : vector<4x8xf32> to vector<4x1xf32>
    %24 = vector.extract_strided_slice %6 {offsets = [2, 0], sizes = [1, 4096], strides = [1, 1]} : vector<8x4096xf32> to vector<1x4096xf32>
    %25 = vector.broadcast %23 : vector<4x1xf32> to vector<4x4096xf32>
    %26 = vector.broadcast %24 : vector<1x4096xf32> to vector<4x4096xf32>
    %27 = arith.mulf %25, %26 : vector<4x4096xf32>
    %28 = arith.addf %22, %27 : vector<4x4096xf32>
    %29 = vector.extract_strided_slice %11 {offsets = [0, 3], sizes = [4, 1], strides = [1, 1]} : vector<4x8xf32> to vector<4x1xf32>
    %30 = vector.extract_strided_slice %6 {offsets = [3, 0], sizes = [1, 4096], strides = [1, 1]} : vector<8x4096xf32> to vector<1x4096xf32>
    %31 = vector.broadcast %29 : vector<4x1xf32> to vector<4x4096xf32>
    %32 = vector.broadcast %30 : vector<1x4096xf32> to vector<4x4096xf32>
    %33 = arith.mulf %31, %32 : vector<4x4096xf32>
    %34 = arith.addf %28, %33 : vector<4x4096xf32>
    %35 = vector.extract_strided_slice %11 {offsets = [0, 4], sizes = [4, 1], strides = [1, 1]} : vector<4x8xf32> to vector<4x1xf32>
    %36 = vector.extract_strided_slice %6 {offsets = [4, 0], sizes = [1, 4096], strides = [1, 1]} : vector<8x4096xf32> to vector<1x4096xf32>
    %37 = vector.broadcast %35 : vector<4x1xf32> to vector<4x4096xf32>
    %38 = vector.broadcast %36 : vector<1x4096xf32> to vector<4x4096xf32>
    %39 = arith.mulf %37, %38 : vector<4x4096xf32>
    %40 = arith.addf %34, %39 : vector<4x4096xf32>
    %41 = vector.extract_strided_slice %11 {offsets = [0, 5], sizes = [4, 1], strides = [1, 1]} : vector<4x8xf32> to vector<4x1xf32>
    %42 = vector.extract_strided_slice %6 {offsets = [5, 0], sizes = [1, 4096], strides = [1, 1]} : vector<8x4096xf32> to vector<1x4096xf32>
    %43 = vector.broadcast %41 : vector<4x1xf32> to vector<4x4096xf32>
    %44 = vector.broadcast %42 : vector<1x4096xf32> to vector<4x4096xf32>
    %45 = arith.mulf %43, %44 : vector<4x4096xf32>
    %46 = arith.addf %40, %45 : vector<4x4096xf32>
    %47 = vector.extract_strided_slice %11 {offsets = [0, 6], sizes = [4, 1], strides = [1, 1]} : vector<4x8xf32> to vector<4x1xf32>
    %48 = vector.extract_strided_slice %6 {offsets = [6, 0], sizes = [1, 4096], strides = [1, 1]} : vector<8x4096xf32> to vector<1x4096xf32>
    %49 = vector.broadcast %47 : vector<4x1xf32> to vector<4x4096xf32>
    %50 = vector.broadcast %48 : vector<1x4096xf32> to vector<4x4096xf32>
    %51 = arith.mulf %49, %50 : vector<4x4096xf32>
    %52 = arith.addf %46, %51 : vector<4x4096xf32>
    %53 = vector.extract_strided_slice %11 {offsets = [0, 7], sizes = [4, 1], strides = [1, 1]} : vector<4x8xf32> to vector<4x1xf32>
    %54 = vector.extract_strided_slice %6 {offsets = [7, 0], sizes = [1, 4096], strides = [1, 1]} : vector<8x4096xf32> to vector<1x4096xf32>
    %55 = vector.broadcast %53 : vector<4x1xf32> to vector<4x4096xf32>
    %56 = vector.broadcast %54 : vector<1x4096xf32> to vector<4x4096xf32>
    %57 = arith.mulf %55, %56 : vector<4x4096xf32>
    %58 = arith.addf %52, %57 : vector<4x4096xf32>
    %59 = vector.broadcast %9 : vector<1x4096xf32> to vector<4x4096xf32>
    %60 = arith.mulf %58, %59 : vector<4x4096xf32>
    %61 = arith.truncf %60 : vector<4x4096xf32> to vector<4x4096xbf16>
    %c0_6 = arith.constant 0 : index
    %c0_7 = arith.constant 0 : index
    %c0_8 = arith.constant 0 : index
    %62 = vector.load %arg4[%c0_6, %c0_7, %c0_8] : memref<1x4x4096xbf16, #tpu.memory_space<vmem>>, vector<1x4x4096xbf16>
    %63 = vector.shape_cast %62 : vector<1x4x4096xbf16> to vector<4x4096xbf16>
    %64 = vector.shape_cast %61 : vector<4x4096xbf16> to vector<1x4x4096xbf16>
    tpu.vector_store %arg4[%c0_6, %c0_7, %c0_8], %64 {strides = array<i32>} : memref<1x4x4096xbf16, #tpu.memory_space<vmem>>, vector<1x4x4096xbf16>,
    %cst_9 = arith.constant dense<0.000000e+00> : vector<4xf32>
    %65 = vector.multi_reduction <add>, %60, %cst_9 [1] : vector<4x4096xf32> to vector<4xf32>
    %66 = vector.shape_cast %65 : vector<4xf32> to vector<4x1xf32>
    %c0_10 = arith.constant 0 : index
    %c0_11 = arith.constant 0 : index
    %c0_12 = arith.constant 0 : index
    %c0_13 = arith.constant 0 : index
    %67 = vector.load %arg5[%c0_10, %c0_11, %c0_12, %c0_13] : memref<1x1x4x1xf32, #tpu.memory_space<vmem>>, vector<1x1x4x1xf32>
    %68 = vector.shape_cast %67 : vector<1x1x4x1xf32> to vector<4x1xf32>
    %69 = vector.shape_cast %66 : vector<4x1xf32> to vector<1x1x4x1xf32>
    tpu.vector_store %arg5[%c0_10, %c0_11, %c0_12, %c0_13], %69 {strides = array<i32>} : memref<1x1x4x1xf32, #tpu.memory_space<vmem>>, vector<1x1x4x1xf32>,
    %70 = arith.mulf %60, %60 : vector<4x4096xf32>
    %cst_14 = arith.constant dense<0.000000e+00> : vector<4xf32>
    %71 = vector.multi_reduction <add>, %70, %cst_14 [1] : vector<4x4096xf32> to vector<4xf32>
    %72 = vector.shape_cast %71 : vector<4xf32> to vector<4x1xf32>
    %c0_15 = arith.constant 0 : index
    %c0_16 = arith.constant 0 : index
    %c0_17 = arith.constant 0 : index
    %c0_18 = arith.constant 0 : index
    %73 = vector.load %arg6[%c0_15, %c0_16, %c0_17, %c0_18] : memref<1x1x4x1xf32, #tpu.memory_space<vmem>>, vector<1x1x4x1xf32>
    %74 = vector.shape_cast %73 : vector<1x1x4x1xf32> to vector<4x1xf32>
    %75 = vector.shape_cast %72 : vector<4x1xf32> to vector<1x1x4x1xf32>
    tpu.vector_store %arg6[%c0_15, %c0_16, %c0_17, %c0_18], %75 {strides = array<i32>} : memref<1x1x4x1xf32, #tpu.memory_space<vmem>>, vector<1x1x4x1xf32>,
    return
  }
  func.func @transform_0(%arg0: i32, %arg1: i32) -> (i32, i32, i32) {
    %c0_i32 = arith.constant 0 : i32
    %c0_i32_0 = arith.constant 0 : i32
    %c0_i32_1 = arith.constant 0 : i32
    return %arg0, %c0_i32, %c0_i32_0 : i32, i32, i32
  }
  func.func @transform_1(%arg0: i32, %arg1: i32) -> (i32, i32, i32) {
    %c0_i32 = arith.constant 0 : i32
    %c0_i32_0 = arith.constant 0 : i32
    return %arg0, %c0_i32, %arg1 : i32, i32, i32
  }
  func.func @transform_2(%arg0: i32, %arg1: i32) -> (i32, i32, i32) {
    %c0_i32 = arith.constant 0 : i32
    %c0_i32_0 = arith.constant 0 : i32
    return %arg0, %c0_i32, %arg1 : i32, i32, i32
  }
  func.func @transform_3(%arg0: i32, %arg1: i32) -> (i32, i32, i32, i32) {
    %c0_i32 = arith.constant 0 : i32
    %c0_i32_0 = arith.constant 0 : i32
    %c0_i32_1 = arith.constant 0 : i32
    return %arg0, %arg1, %c0_i32, %c0_i32_0 : i32, i32, i32, i32
  }
  func.func @transform_4(%arg0: i32, %arg1: i32) -> (i32, i32, i32, i32) {
    %c0_i32 = arith.constant 0 : i32
    %c0_i32_0 = arith.constant 0 : i32
    %c0_i32_1 = arith.constant 0 : i32
    return %arg0, %arg1, %c0_i32, %c0_i32_0 : i32, i32, i32, i32
  }
}

module attributes {stable_mosaic.version = 11 : i64} {
  func.func @_bn_apply_relu_kernel(%arg0: i32, %arg1: i32, %arg2: memref<1x4x4096xbf16, #tpu.memory_space<vmem>>, %arg3: memref<4x1xf32, #tpu.memory_space<vmem>>, %arg4: memref<4x1xf32, #tpu.memory_space<vmem>>, %arg5: memref<1x4x4096xf32, #tpu.memory_space<vmem>>) attributes {dimension_semantics = [#tpu.dimension_semantics<parallel>, #tpu.dimension_semantics<parallel>], iteration_bounds = array<i64: 2, 1>, scalar_prefetch = 0 : i64, scratch_operands = 0 : i64, tpu.core_type = #tpu.core_type<tc>, window_params = [{transform_indices = @transform_0, window_bounds = array<i64: 1, 4, 4096>}, {pipeline_mode = #tpu.pipeline_mode<synchronous>, transform_indices = @transform_1, window_bounds = array<i64: 4, 1>}, {pipeline_mode = #tpu.pipeline_mode<synchronous>, transform_indices = @transform_2, window_bounds = array<i64: 4, 1>}, {transform_indices = @transform_3, window_bounds = array<i64: 1, 4, 4096>}]} {
    %c0 = arith.constant 0 : index
    %c0_0 = arith.constant 0 : index
    %c0_1 = arith.constant 0 : index
    %0 = vector.load %arg2[%c0, %c0_0, %c0_1] : memref<1x4x4096xbf16, #tpu.memory_space<vmem>>, vector<1x4x4096xbf16>
    %1 = vector.shape_cast %0 : vector<1x4x4096xbf16> to vector<4x4096xbf16>
    %2 = arith.extf %1 : vector<4x4096xbf16> to vector<4x4096xf32>
    %c0_2 = arith.constant 0 : index
    %c0_3 = arith.constant 0 : index
    %3 = vector.load %arg3[%c0_2, %c0_3] : memref<4x1xf32, #tpu.memory_space<vmem>>, vector<4x1xf32>
    %4 = vector.broadcast %3 : vector<4x1xf32> to vector<4x4096xf32>
    %5 = arith.mulf %2, %4 : vector<4x4096xf32>
    %c0_4 = arith.constant 0 : index
    %c0_5 = arith.constant 0 : index
    %6 = vector.load %arg4[%c0_4, %c0_5] : memref<4x1xf32, #tpu.memory_space<vmem>>, vector<4x1xf32>
    %7 = vector.broadcast %6 : vector<4x1xf32> to vector<4x4096xf32>
    %8 = arith.addf %5, %7 : vector<4x4096xf32>
    %cst = arith.constant 0.000000e+00 : f32
    %9 = vector.broadcast %cst : f32 to vector<4x4096xf32>
    %10 = arith.maximumf %8, %9 : vector<4x4096xf32>
    %c0_6 = arith.constant 0 : index
    %c0_7 = arith.constant 0 : index
    %c0_8 = arith.constant 0 : index
    %11 = vector.load %arg5[%c0_6, %c0_7, %c0_8] : memref<1x4x4096xf32, #tpu.memory_space<vmem>>, vector<1x4x4096xf32>
    %12 = vector.shape_cast %11 : vector<1x4x4096xf32> to vector<4x4096xf32>
    %13 = vector.shape_cast %10 : vector<4x4096xf32> to vector<1x4x4096xf32>
    tpu.vector_store %arg5[%c0_6, %c0_7, %c0_8], %13 {strides = array<i32>} : memref<1x4x4096xf32, #tpu.memory_space<vmem>>, vector<1x4x4096xf32>,
    return
  }
  func.func @transform_0(%arg0: i32, %arg1: i32) -> (i32, i32, i32) {
    %c0_i32 = arith.constant 0 : i32
    %c0_i32_0 = arith.constant 0 : i32
    return %arg0, %c0_i32, %arg1 : i32, i32, i32
  }
  func.func @transform_1(%arg0: i32, %arg1: i32) -> (i32, i32) {
    %c0_i32 = arith.constant 0 : i32
    %c0_i32_0 = arith.constant 0 : i32
    %c0_i32_1 = arith.constant 0 : i32
    return %c0_i32, %c0_i32_0 : i32, i32
  }
  func.func @transform_2(%arg0: i32, %arg1: i32) -> (i32, i32) {
    %c0_i32 = arith.constant 0 : i32
    %c0_i32_0 = arith.constant 0 : i32
    %c0_i32_1 = arith.constant 0 : i32
    return %c0_i32, %c0_i32_0 : i32, i32
  }
  func.func @transform_3(%arg0: i32, %arg1: i32) -> (i32, i32, i32) {
    %c0_i32 = arith.constant 0 : i32
    %c0_i32_0 = arith.constant 0 : i32
    return %arg0, %c0_i32, %arg1 : i32, i32, i32
  }
}

</mosaic_0001>

<llo_original>
// kernel: graph_to_featuremaps.3
$region0: #{graph_to_featuremaps.3}
  #allocation0 [shape = 'u32[]', space=smem, size = 0x4, offset = 0x4, fixed_abs, tag = 'smem constant byte address 0x4 - core index']
  #allocation1 [shape = 'u32[144,128]{1,0:T(1,128)}', space=vmem, size = 0x12000, scoped, tag = 'internal scratch']
  %s0 = inlined_call_operand.vmem [shape: bf16[2,4,4096], index: 0, kind: input, shape index: {}]
  %s1 = inlined_call_operand.vmem [shape: f32[4,1], index: 1, kind: input, shape index: {}]
  %s2 = inlined_call_operand.vmem [shape: f32[4,1], index: 2, kind: input, shape index: {}]
  %s3 = inlined_call_operand.vmem [shape: f32[2,4,4096], index: 3, kind: output, shape index: {}]
  %s4 = sld [smem:[#allocation0]]
  $region45: #{graph_to_featuremaps.3} parent=0
    _
  %s6 = ssub.s32 1, %s4
  %s7 = scalar_select 0, %s6, %s4
  loop: start=0, step=1, limit=4
  $region2: #{graph_to_featuremaps.3} parent=0 // loop_pre_header
    _
  $region3: #{graph_to_featuremaps.3} parent=0 // loop_header
    %s9 = sphi 0, %s13
    %p10 = scmp.ge.s32.totalorder %s9, 4
    %s16 = sphi 0, %s28
    %s17 = sphi 0, %s24
    %s18 = sphi 0, %s16
    %s19 = sphi 0, %s17
    %s20 = sphi 0, %s18
    %s21 = sphi 0, %s19
    %s33 = sphi 0, %s35
    %s36 = sphi 0, %s33
    %s37 = sphi 0, %s36
    %s53 = sphi 0, %s37
    %s57 = sphi 0, %s57
    %s59 = sphi 0, %s57
    %s60 = sphi 0, %s59
    %s74 = sphi 0, %s60
    %s78 = sphi 0, %s78
    %s80 = sphi 0, %s78
    %s81 = sphi 0, %s80
    %s95 = sphi 0, %s81
    %s103 = sphi 0, %s105
    %s106 = sphi 0, %s103
    %s107 = sphi 0, %s106
    %s123 = sphi 0, %s107
  $region4: #{graph_to_featuremaps.3} parent=0 // loop_header_branch
    %12 = sbr.rel (%p10) target = $region8
  $region5: #{graph_to_featuremaps.3} parent=0 // loop_body
    %s14 = ssub.s32 %s9, 1
    %s15 = ssub.s32 %s9, 2
    %s22 = sadd.s32 1, %s17
    %p23 = scmp.ge.s32.totalorder %s22, 1
    %s24 = scalar_select %p23, 0, %s22
    %s25 = sadd.s32 1, %s16
    %s26 = scalar_select %p23, %s25, %s16
    %p27 = scmp.ge.s32.totalorder %s26, 2
    %s28 = scalar_select %p27, 0, %s26
    %s29 = ssub.s32 %s16, %s28
    %s30 = ssub.s32 %s17, %s24
    %s31 = sor.u32 %s29, %s30
    %p32 = scmp.eq.s32.totalorder %s31, 0
    %s34 = sadd.s32 %s33, 1
    %s35 = scalar_select %p32, %s33, %s34
    %p38 = pneg %p32
    %p39 = scmp.eq.s32.totalorder %s9, 1
    %p40 = por %p38, %p39
    %p41 = scmp.ne.s32.totalorder %s33, %s36
    %p42 = scmp.eq.s32.totalorder %s9, 0
    %p43 = por %p41, %p42
    %p44 = scmp.ne.s32.totalorder %s33, %s36
    %p45 = scmp.eq.s32.totalorder %s14, 1
    %p46 = por %p44, %p45
    %p47 = scmp.ne.s32.totalorder %s36, %s37
    %p48 = scmp.eq.s32.totalorder %s14, 0
    %p49 = por %p47, %p48
    %p50 = scmp.ne.s32.totalorder %s36, %s37
    %p51 = scmp.eq.s32.totalorder %s15, 1
    %p52 = por %p50, %p51
    %p54 = scmp.ne.s32.totalorder %s37, %s53
    %p55 = scmp.eq.s32.totalorder %s15, 0
    %p56 = por %p54, %p55
    %s58 = sadd.s32 %s57, 1
    %p61 = scmp.eq.s32.totalorder %s9, 1
    %p62 = scmp.ne.s32.totalorder %s57, %s59
    %p63 = scmp.eq.s32.totalorder %s9, 0
    %p64 = por %p62, %p63
    %p65 = scmp.ne.s32.totalorder %s57, %s59
    %p66 = scmp.eq.s32.totalorder %s14, 1
    %p67 = por %p65, %p66
    %p68 = scmp.ne.s32.totalorder %s59, %s60
    %p69 = scmp.eq.s32.totalorder %s14, 0
    %p70 = por %p68, %p69
    %p71 = scmp.ne.s32.totalorder %s59, %s60
    %p72 = scmp.eq.s32.totalorder %s15, 1
    %p73 = por %p71, %p72
    %p75 = scmp.ne.s32.totalorder %s60, %s74
    %p76 = scmp.eq.s32.totalorder %s15, 0
    %p77 = por %p75, %p76
    %s79 = sadd.s32 %s78, 1
    %p82 = scmp.eq.s32.totalorder %s9, 1
    %p83 = scmp.ne.s32.totalorder %s78, %s80
    %p84 = scmp.eq.s32.totalorder %s9, 0
    %p85 = por %p83, %p84
    %p86 = scmp.ne.s32.totalorder %s78, %s80
    %p87 = scmp.eq.s32.totalorder %s14, 1
    %p88 = por %p86, %p87
    %p89 = scmp.ne.s32.totalorder %s80, %s81
    %p90 = scmp.eq.s32.totalorder %s14, 0
    %p91 = por %p89, %p90
    %p92 = scmp.ne.s32.totalorder %s80, %s81
    %p93 = scmp.eq.s32.totalorder %s15, 1
    %p94 = por %p92, %p93
    %p96 = scmp.ne.s32.totalorder %s81, %s95
    %p97 = scmp.eq.s32.totalorder %s15, 0
    %p98 = por %p96, %p97
    %s99 = ssub.s32 %s16, %s28
    %s100 = ssub.s32 %s17, %s24
    %s101 = sor.u32 %s99, %s100
    %p102 = scmp.eq.s32.totalorder %s101, 0
    %s104 = sadd.s32 %s103, 1
    %s105 = scalar_select %p102, %s103, %s104
    %p108 = pneg %p102
    %p109 = scmp.eq.s32.totalorder %s9, 1
    %p110 = por %p108, %p109
    %p111 = scmp.ne.s32.totalorder %s103, %s106
    %p112 = scmp.eq.s32.totalorder %s9, 0
    %p113 = por %p111, %p112
    %p114 = scmp.ne.s32.totalorder %s103, %s106
    %p115 = scmp.eq.s32.totalorder %s14, 1
    %p116 = por %p114, %p115
    %p117 = scmp.ne.s32.totalorder %s106, %s107
    %p118 = scmp.eq.s32.totalorder %s14, 0
    %p119 = por %p117, %p118
    %p120 = scmp.ne.s32.totalorder %s106, %s107
    %p121 = scmp.eq.s32.totalorder %s15, 1
    %p122 = por %p120, %p121
    %p124 = scmp.ne.s32.totalorder %s107, %s123
    %p125 = scmp.eq.s32.totalorder %s15, 0
    %p126 = por %p124, %p125
    %p127 = scmp.le.s32.totalorder 1, %s9
    %p128 = scmp.lt.s32.totalorder %s9, 3
    %p129 = pnand %p127, %p128
    %p130 = pneg %p129
    // Predicated region
    $region9: #{graph_to_featuremaps.3} parent=5 // pred_check
      _
    $region10: #{graph_to_featuremaps.3} parent=5 // pred_check_branch
      %132 = sbr.rel (%p129) target = $region12
    $region11: #{graph_to_featuremaps.3} parent=5 // pred_region
      %s133 = ssub.s32 %s9, 1
      // Predicated region
      $region13: #{graph_to_featuremaps.3} parent=11 // pred_check
        %p134 = pneg %p70
      $region14: #{graph_to_featuremaps.3} parent=11 // pred_check_branch
        %136 = sbr.rel (%p134) target = $region16
      $region15: #{graph_to_featuremaps.3} parent=11 // pred_region
        _
      $region16: #{graph_to_featuremaps.3} parent=11 // pred_fallthru
        _
      // Predicated region
      $region17: #{graph_to_featuremaps.3} parent=11 // pred_check
        %p137 = pneg %p91
      $region18: #{graph_to_featuremaps.3} parent=11 // pred_check_branch
        %139 = sbr.rel (%p137) target = $region20
      $region19: #{graph_to_featuremaps.3} parent=11 // pred_region
        _
      $region20: #{graph_to_featuremaps.3} parent=11 // pred_fallthru
        _
    $region12: #{graph_to_featuremaps.3} parent=5 // pred_fallthru
      _
    %p140 = scmp.lt.s32.totalorder %s9, 2
    // Predicated region
    $region21: #{graph_to_featuremaps.3} parent=5 // pred_check
      %p141 = pneg %p140
    $region22: #{graph_to_featuremaps.3} parent=5 // pred_check_branch
      %143 = sbr.rel (%p141) target = $region24
    $region23: #{graph_to_featuremaps.3} parent=5 // pred_region
      // Predicated region
      $region25: #{graph_to_featuremaps.3} parent=23 // pred_check
        %p144 = pneg %p43
      $region26: #{graph_to_featuremaps.3} parent=23 // pred_check_branch
        %146 = sbr.rel (%p144) target = $region28
      $region27: #{graph_to_featuremaps.3} parent=23 // pred_region
        %s147 = smul.u32 32, %s17
        %p148 = scmp.lt.s32.totalorder %s16, 1
        %s149 = scalar_select %p148, %s16, 1
        %p150 = scmp.lt.s32.totalorder %s147, 31
        %s151 = scalar_select %p150, %s147, 31
        %s152 = smul.addr %s149, 32
        %s153 = sadd.s32 %s151, %s152
        %s154 = smul.addr %s153, 2
        %s155 = scalar_lea.vmem %s0, %s154
        %s156 = smul.u32 32, %s17
      $region28: #{graph_to_featuremaps.3} parent=23 // pred_fallthru
        _
    $region24: #{graph_to_featuremaps.3} parent=5 // pred_fallthru
      _
    %p157 = scmp.le.s32.totalorder 1, %s9
    %p158 = scmp.lt.s32.totalorder %s9, 3
    %p159 = pnand %p157, %p158
    %p160 = pneg %p159
    // Predicated region
    $region29: #{graph_to_featuremaps.3} parent=5 // pred_check
      _
    $region30: #{graph_to_featuremaps.3} parent=5 // pred_check_branch
      %162 = sbr.rel (%p159) target = $region32
    $region31: #{graph_to_featuremaps.3} parent=5 // pred_region
      %s163 = ssub.s32 %s9, 1
      %s164 = smul.u32 32, %s19
      %p165 = scmp.lt.s32.totalorder %s18, 1
      %s166 = scalar_select %p165, %s18, 1
      %p167 = scmp.lt.s32.totalorder %s164, 31
      %s168 = scalar_select %p167, %s164, 31
      %s169 = smul.addr %s166, 32
      %s170 = sadd.s32 %s168, %s169
      %s171 = smul.addr %s170, 2
      %s172 = scalar_lea.vmem %s0, %s171
      %p173 = pneg %p49
      %p174 = pneg %p46
      %p175 = pneg %p70
      %p176 = pneg %p67
      %p177 = pneg %p91
      %p178 = pneg %p88
      %p179 = pneg %p119
      %p180 = pneg %p116
      %s181 = smul.u32 32, %s19
      %p182 = scmp.lt.s32.totalorder %s18, 1
      %s183 = scalar_select %p182, %s18, 1
      %p184 = scmp.lt.s32.totalorder %s181, 31
      %s185 = scalar_select %p184, %s181, 31
      %s186 = smul.addr %s183, 32
      %s187 = sadd.s32 %s185, %s186
      %s188 = smul.addr %s187, 4
      %s189 = scalar_lea.vmem %s3, %s188
      %s190 = smul.u32 32, %s19
      %p191 = scmp.lt.s32.totalorder %s18, 1
      %s192 = scalar_select %p191, %s18, 1
      %p193 = scmp.lt.s32.totalorder %s190, 31
      %s194 = scalar_select %p193, %s190, 31
      %s195 = smul.addr %s192, 32
      %s196 = sadd.s32 %s194, %s195
      %s197 = smul.addr %s196, 2
      %s198 = scalar_lea.vmem %s0, %s197
      %s199 = smul.u32 32, %s19
      %s200 = smul.u32 32, %s19
      %p201 = scmp.lt.s32.totalorder %s18, 1
      %s202 = scalar_select %p201, %s18, 1
      %p203 = scmp.lt.s32.totalorder %s200, 31
      %s204 = scalar_select %p203, %s200, 31
      %s205 = smul.addr %s202, 32
      %s206 = sadd.s32 %s204, %s205
      %s207 = smul.addr %s206, 4
      %s208 = scalar_lea.vmem %s3, %s207
      %s209 = smul.u32 32, %s19
      %v210 = vld [vmem:[%s198] sm:$0xff]
      %v211 = vld [vmem:[%s198 + $0x8] sm:$0xff]
      %v212 = vld [vmem:[%s198 + $0x10] sm:$0xff]
      %v213 = vld [vmem:[%s198 + $0x18] sm:$0xff]
      %v214 = vld [vmem:[%s198 + $0x20] sm:$0xff]
      %v215 = vld [vmem:[%s198 + $0x28] sm:$0xff]
      %v216 = vld [vmem:[%s198 + $0x30] sm:$0xff]
      %v217 = vld [vmem:[%s198 + $0x38] sm:$0xff]
      %v218 = vunpack.c.l.bf16 %v210
      %v219 = vunpack.c.h.bf16 %v210
      %v220 = vunpack.c.l.bf16 %v211
      %v221 = vunpack.c.h.bf16 %v211
      %v222 = vunpack.c.l.bf16 %v212
      %v223 = vunpack.c.h.bf16 %v212
      %v224 = vunpack.c.l.bf16 %v213
      %v225 = vunpack.c.h.bf16 %v213
      %v226 = vunpack.c.l.bf16 %v214
      %v227 = vunpack.c.h.bf16 %v214
      %v228 = vunpack.c.l.bf16 %v215
      %v229 = vunpack.c.h.bf16 %v215
      %v230 = vunpack.c.l.bf16 %v216
      %v231 = vunpack.c.h.bf16 %v216
      %v232 = vunpack.c.l.bf16 %v217
      %v233 = vunpack.c.h.bf16 %v217
      %v234 = vld [vmem:[%s1] sm:$0xf]
      %236 = vset.pattern.permute.xlu0 0
      %237 = vperm.xlu0 %236, %v234
      %v238 = vpop.permute.xlu0 %237
      %v240 = vunpack.c.l.s4 839922192
      %v241 = vunpack.c.0.s8 %v240
      %v242 = vlaneseq
      %v243 = vshrl.u32 %v242, 7
      %v244 = vsub.s32 %v241, %v243
      %v245 = vrot.slane %v238, %v244
      %v247 = vmul.f32 %v218, %v245
      %v248 = vmul.f32 %v219, %v245
      %v249 = vmul.f32 %v220, %v245
      %v250 = vmul.f32 %v221, %v245
      %v251 = vmul.f32 %v222, %v245
      %v252 = vmul.f32 %v223, %v245
      %v253 = vmul.f32 %v224, %v245
      %v254 = vmul.f32 %v225, %v245
      %v255 = vmul.f32 %v226, %v245
      %v256 = vmul.f32 %v227, %v245
      %v257 = vmul.f32 %v228, %v245
      %v258 = vmul.f32 %v229, %v245
      %v259 = vmul.f32 %v230, %v245
      %v260 = vmul.f32 %v231, %v245
      %v261 = vmul.f32 %v232, %v245
      %v262 = vmul.f32 %v233, %v245
      %v263 = vld [vmem:[%s2] sm:$0xf]
      %265 = vset.pattern.permute.xlu0 0
      %266 = vperm.xlu0 %265, %v263
      %v267 = vpop.permute.xlu0 %266
      %v269 = vunpack.c.l.s4 839922192
      %v270 = vunpack.c.0.s8 %v269
      %v271 = vlaneseq
      %v272 = vshrl.u32 %v271, 7
      %v273 = vsub.s32 %v270, %v272
      %v274 = vrot.slane %v267, %v273
      %v276 = vadd.f32 %v247, %v274
      %v277 = vadd.f32 %v248, %v274
      %v278 = vadd.f32 %v249, %v274
      %v279 = vadd.f32 %v250, %v274
      %v280 = vadd.f32 %v251, %v274
      %v281 = vadd.f32 %v252, %v274
      %v282 = vadd.f32 %v253, %v274
      %v283 = vadd.f32 %v254, %v274
      %v284 = vadd.f32 %v255, %v274
      %v285 = vadd.f32 %v256, %v274
      %v286 = vadd.f32 %v257, %v274
      %v287 = vadd.f32 %v258, %v274
      %v288 = vadd.f32 %v259, %v274
      %v289 = vadd.f32 %v260, %v274
      %v290 = vadd.f32 %v261, %v274
      %v291 = vadd.f32 %v262, %v274
      %v292 = vmax.f32 %v276, 0.0
      %v293 = vmax.f32 %v277, 0.0
      %v294 = vmax.f32 %v278, 0.0
      %v295 = vmax.f32 %v279, 0.0
      %v296 = vmax.f32 %v280, 0.0
      %v297 = vmax.f32 %v281, 0.0
      %v298 = vmax.f32 %v282, 0.0
      %v299 = vmax.f32 %v283, 0.0
      %v300 = vmax.f32 %v284, 0.0
      %v301 = vmax.f32 %v285, 0.0
      %v302 = vmax.f32 %v286, 0.0
      %v303 = vmax.f32 %v287, 0.0
      %v304 = vmax.f32 %v288, 0.0
      %v305 = vmax.f32 %v289, 0.0
      %v306 = vmax.f32 %v290, 0.0
      %v307 = vmax.f32 %v291, 0.0
      %308 = vst [vmem:[%s208] sm:$0xff] %v292
      %309 = vst [vmem:[%s208 + $0x8] sm:$0xff] %v293
      %310 = vst [vmem:[%s208 + $0x10] sm:$0xff] %v294
      %311 = vst [vmem:[%s208 + $0x18] sm:$0xff] %v295
      %312 = vst [vmem:[%s208 + $0x20] sm:$0xff] %v296
      %313 = vst [vmem:[%s208 + $0x28] sm:$0xff] %v297
      %314 = vst [vmem:[%s208 + $0x30] sm:$0xff] %v298
      %315 = vst [vmem:[%s208 + $0x38] sm:$0xff] %v299
      %316 = vst [vmem:[%s208 + $0x40] sm:$0xff] %v300
      %317 = vst [vmem:[%s208 + $0x48] sm:$0xff] %v301
      %318 = vst [vmem:[%s208 + $0x50] sm:$0xff] %v302
      %319 = vst [vmem:[%s208 + $0x58] sm:$0xff] %v303
      %320 = vst [vmem:[%s208 + $0x60] sm:$0xff] %v304
      %321 = vst [vmem:[%s208 + $0x68] sm:$0xff] %v305
      %322 = vst [vmem:[%s208 + $0x70] sm:$0xff] %v306
      %323 = vst [vmem:[%s208 + $0x78] sm:$0xff] %v307
      %s324 = smul.u32 32, %s19
      %p325 = scmp.lt.s32.totalorder %s18, 1
      %s326 = scalar_select %p325, %s18, 1
      %p327 = scmp.lt.s32.totalorder %s324, 31
      %s328 = scalar_select %p327, %s324, 31
      %s329 = smul.addr %s326, 32
      %s330 = sadd.s32 %s328, %s329
      %s331 = smul.addr %s330, 4
      %s332 = scalar_lea.vmem %s3, %s331
      // Predicated region
      $region33: #{graph_to_featuremaps.3} parent=31 // pred_check
        %p333 = pneg %p116
      $region34: #{graph_to_featuremaps.3} parent=31 // pred_check_branch
        %335 = sbr.rel (%p333) target = $region36
      $region35: #{graph_to_featuremaps.3} parent=31 // pred_region
        %s336 = smul.u32 32, %s19
      $region36: #{graph_to_featuremaps.3} parent=31 // pred_fallthru
        _
    $region32: #{graph_to_featuremaps.3} parent=5 // pred_fallthru
      _
    %p337 = scmp.le.s32.totalorder 2, %s9
    // Predicated region
    $region37: #{graph_to_featuremaps.3} parent=5 // pred_check
      %p338 = pneg %p337
    $region38: #{graph_to_featuremaps.3} parent=5 // pred_check_branch
      %340 = sbr.rel (%p338) target = $region40
    $region39: #{graph_to_featuremaps.3} parent=5 // pred_region
      %s341 = ssub.s32 %s9, 2
      // Predicated region
      $region41: #{graph_to_featuremaps.3} parent=39 // pred_check
        %p342 = pneg %p122
      $region42: #{graph_to_featuremaps.3} parent=39 // pred_check_branch
        %344 = sbr.rel (%p342) target = $region44
      $region43: #{graph_to_featuremaps.3} parent=39 // pred_region
        %s345 = smul.u32 32, %s21
        %p346 = scmp.lt.s32.totalorder %s20, 1
        %s347 = scalar_select %p346, %s20, 1
        %p348 = scmp.lt.s32.totalorder %s345, 31
        %s349 = scalar_select %p348, %s345, 31
        %s350 = smul.addr %s347, 32
        %s351 = sadd.s32 %s349, %s350
        %s352 = smul.addr %s351, 4
        %s353 = scalar_lea.vmem %s3, %s352
      $region44: #{graph_to_featuremaps.3} parent=39 // pred_fallthru
        _
    $region40: #{graph_to_featuremaps.3} parent=5 // pred_fallthru
      _
  $region6: #{graph_to_featuremaps.3} parent=0 // loop_footer
    %s13 = sadd.s32 1, %s9
  $region7: #{graph_to_featuremaps.3} parent=0 // loop_footer_branch
    %8 = sbr.rel target = $region3
  $region8: #{graph_to_featuremaps.3} parent=0 // loop_exit
    _

// kernel: graph_to_featuremaps.2
$region0: #{graph_to_featuremaps.2}
  #allocation0 [shape = 'u32[]', space=smem, size = 0x4, offset = 0x4, fixed_abs, tag = 'smem constant byte address 0x4 - core index']
  #allocation1 [shape = 'u32[144,128]{1,0:T(1,128)}', space=vmem, size = 0x12000, scoped, tag = 'internal scratch']
  %s0 = inlined_call_operand.vmem [shape: f32[2,4,8], index: 0, kind: input, shape index: {}]
  %s1 = inlined_call_operand.vmem [shape: f32[2,8,4096], index: 1, kind: input, shape index: {}]
  %s2 = inlined_call_operand.vmem [shape: bf16[2,4,4096], index: 2, kind: output, shape index: {0}]
  %s3 = inlined_call_operand.vmem [shape: f32[2,1,4,1], index: 3, kind: output, shape index: {1}]
  %s4 = inlined_call_operand.vmem [shape: f32[2,1,4,1], index: 4, kind: output, shape index: {2}]
  %5 = xla_tuple %s2, %s3, %s4
  %s6 = sld [smem:[#allocation0]]
  $region57: #{graph_to_featuremaps.2} parent=0
    _
  %s8 = ssub.s32 1, %s6
  %s9 = scalar_select 0, %s8, %s6
  loop: start=0, step=1, limit=4
  $region2: #{graph_to_featuremaps.2} parent=0 // loop_pre_header
    _
  $region3: #{graph_to_featuremaps.2} parent=0 // loop_header
    %s11 = sphi 0, %s15
    %p12 = scmp.ge.s32.totalorder %s11, 4
    %s18 = sphi 0, %s30
    %s19 = sphi 0, %s26
    %s20 = sphi 0, %s18
    %s21 = sphi 0, %s19
    %s22 = sphi 0, %s20
    %s23 = sphi 0, %s21
    %s33 = sphi 0, %s35
    %s36 = sphi 0, %s33
    %s37 = sphi 0, %s36
    %s53 = sphi 0, %s37
    %s61 = sphi 0, %s63
    %s64 = sphi 0, %s61
    %s65 = sphi 0, %s64
    %s81 = sphi 0, %s65
    %s89 = sphi 0, %s91
    %s92 = sphi 0, %s89
    %s93 = sphi 0, %s92
    %s109 = sphi 0, %s93
    %s117 = sphi 0, %s119
    %s120 = sphi 0, %s117
    %s121 = sphi 0, %s120
    %s137 = sphi 0, %s121
    %s145 = sphi 0, %s147
    %s148 = sphi 0, %s145
    %s149 = sphi 0, %s148
    %s165 = sphi 0, %s149
  $region4: #{graph_to_featuremaps.2} parent=0 // loop_header_branch
    %14 = sbr.rel (%p12) target = $region8
  $region5: #{graph_to_featuremaps.2} parent=0 // loop_body
    %s16 = ssub.s32 %s11, 1
    %s17 = ssub.s32 %s11, 2
    %s24 = sadd.s32 1, %s19
    %p25 = scmp.ge.s32.totalorder %s24, 1
    %s26 = scalar_select %p25, 0, %s24
    %s27 = sadd.s32 1, %s18
    %s28 = scalar_select %p25, %s27, %s18
    %p29 = scmp.ge.s32.totalorder %s28, 2
    %s30 = scalar_select %p29, 0, %s28
    %s31 = ssub.s32 %s18, %s30
    %p32 = scmp.eq.s32.totalorder %s31, 0
    %s34 = sadd.s32 %s33, 1
    %s35 = scalar_select %p32, %s33, %s34
    %p38 = pneg %p32
    %p39 = scmp.eq.s32.totalorder %s11, 1
    %p40 = por %p38, %p39
    %p41 = scmp.ne.s32.totalorder %s33, %s36
    %p42 = scmp.eq.s32.totalorder %s11, 0
    %p43 = por %p41, %p42
    %p44 = scmp.ne.s32.totalorder %s33, %s36
    %p45 = scmp.eq.s32.totalorder %s16, 1
    %p46 = por %p44, %p45
    %p47 = scmp.ne.s32.totalorder %s36, %s37
    %p48 = scmp.eq.s32.totalorder %s16, 0
    %p49 = por %p47, %p48
    %p50 = scmp.ne.s32.totalorder %s36, %s37
    %p51 = scmp.eq.s32.totalorder %s17, 1
    %p52 = por %p50, %p51
    %p54 = scmp.ne.s32.totalorder %s37, %s53
    %p55 = scmp.eq.s32.totalorder %s17, 0
    %p56 = por %p54, %p55
    %s57 = ssub.s32 %s18, %s30
    %s58 = ssub.s32 %s19, %s26
    %s59 = sor.u32 %s57, %s58
    %p60 = scmp.eq.s32.totalorder %s59, 0
    %s62 = sadd.s32 %s61, 1
    %s63 = scalar_select %p60, %s61, %s62
    %p66 = pneg %p60
    %p67 = scmp.eq.s32.totalorder %s11, 1
    %p68 = por %p66, %p67
    %p69 = scmp.ne.s32.totalorder %s61, %s64
    %p70 = scmp.eq.s32.totalorder %s11, 0
    %p71 = por %p69, %p70
    %p72 = scmp.ne.s32.totalorder %s61, %s64
    %p73 = scmp.eq.s32.totalorder %s16, 1
    %p74 = por %p72, %p73
    %p75 = scmp.ne.s32.totalorder %s64, %s65
    %p76 = scmp.eq.s32.totalorder %s16, 0
    %p77 = por %p75, %p76
    %p78 = scmp.ne.s32.totalorder %s64, %s65
    %p79 = scmp.eq.s32.totalorder %s17, 1
    %p80 = por %p78, %p79
    %p82 = scmp.ne.s32.totalorder %s65, %s81
    %p83 = scmp.eq.s32.totalorder %s17, 0
    %p84 = por %p82, %p83
    %s85 = ssub.s32 %s18, %s30
    %s86 = ssub.s32 %s19, %s26
    %s87 = sor.u32 %s85, %s86
    %p88 = scmp.eq.s32.totalorder %s87, 0
    %s90 = sadd.s32 %s89, 1
    %s91 = scalar_select %p88, %s89, %s90
    %p94 = pneg %p88
    %p95 = scmp.eq.s32.totalorder %s11, 1
    %p96 = por %p94, %p95
    %p97 = scmp.ne.s32.totalorder %s89, %s92
    %p98 = scmp.eq.s32.totalorder %s11, 0
    %p99 = por %p97, %p98
    %p100 = scmp.ne.s32.totalorder %s89, %s92
    %p101 = scmp.eq.s32.totalorder %s16, 1
    %p102 = por %p100, %p101
    %p103 = scmp.ne.s32.totalorder %s92, %s93
    %p104 = scmp.eq.s32.totalorder %s16, 0
    %p105 = por %p103, %p104
    %p106 = scmp.ne.s32.totalorder %s92, %s93
    %p107 = scmp.eq.s32.totalorder %s17, 1
    %p108 = por %p106, %p107
    %p110 = scmp.ne.s32.totalorder %s93, %s109
    %p111 = scmp.eq.s32.totalorder %s17, 0
    %p112 = por %p110, %p111
    %s113 = ssub.s32 %s18, %s30
    %s114 = ssub.s32 %s19, %s26
    %s115 = sor.u32 %s113, %s114
    %p116 = scmp.eq.s32.totalorder %s115, 0
    %s118 = sadd.s32 %s117, 1
    %s119 = scalar_select %p116, %s117, %s118
    %p122 = pneg %p116
    %p123 = scmp.eq.s32.totalorder %s11, 1
    %p124 = por %p122, %p123
    %p125 = scmp.ne.s32.totalorder %s117, %s120
    %p126 = scmp.eq.s32.totalorder %s11, 0
    %p127 = por %p125, %p126
    %p128 = scmp.ne.s32.totalorder %s117, %s120
    %p129 = scmp.eq.s32.totalorder %s16, 1
    %p130 = por %p128, %p129
    %p131 = scmp.ne.s32.totalorder %s120, %s121
    %p132 = scmp.eq.s32.totalorder %s16, 0
    %p133 = por %p131, %p132
    %p134 = scmp.ne.s32.totalorder %s120, %s121
    %p135 = scmp.eq.s32.totalorder %s17, 1
    %p136 = por %p134, %p135
    %p138 = scmp.ne.s32.totalorder %s121, %s137
    %p139 = scmp.eq.s32.totalorder %s17, 0
    %p140 = por %p138, %p139
    %s141 = ssub.s32 %s18, %s30
    %s142 = ssub.s32 %s19, %s26
    %s143 = sor.u32 %s141, %s142
    %p144 = scmp.eq.s32.totalorder %s143, 0
    %s146 = sadd.s32 %s145, 1
    %s147 = scalar_select %p144, %s145, %s146
    %p150 = pneg %p144
    %p151 = scmp.eq.s32.totalorder %s11, 1
    %p152 = por %p150, %p151
    %p153 = scmp.ne.s32.totalorder %s145, %s148
    %p154 = scmp.eq.s32.totalorder %s11, 0
    %p155 = por %p153, %p154
    %p156 = scmp.ne.s32.totalorder %s145, %s148
    %p157 = scmp.eq.s32.totalorder %s16, 1
    %p158 = por %p156, %p157
    %p159 = scmp.ne.s32.totalorder %s148, %s149
    %p160 = scmp.eq.s32.totalorder %s16, 0
    %p161 = por %p159, %p160
    %p162 = scmp.ne.s32.totalorder %s148, %s149
    %p163 = scmp.eq.s32.totalorder %s17, 1
    %p164 = por %p162, %p163
    %p166 = scmp.ne.s32.totalorder %s149, %s165
    %p167 = scmp.eq.s32.totalorder %s17, 0
    %p168 = por %p166, %p167
    %p169 = scmp.le.s32.totalorder 1, %s11
    %p170 = scmp.lt.s32.totalorder %s11, 3
    %p171 = pnand %p169, %p170
    %p172 = pneg %p171
    // Predicated region
    $region9: #{graph_to_featuremaps.2} parent=5 // pred_check
      _
    $region10: #{graph_to_featuremaps.2} parent=5 // pred_check_branch
      %174 = sbr.rel (%p171) target = $region12
    $region11: #{graph_to_featuremaps.2} parent=5 // pred_region
      %s175 = ssub.s32 %s11, 1
    $region12: #{graph_to_featuremaps.2} parent=5 // pred_fallthru
      _
    %p176 = scmp.lt.s32.totalorder %s11, 2
    // Predicated region
    $region13: #{graph_to_featuremaps.2} parent=5 // pred_check
      %p177 = pneg %p176
    $region14: #{graph_to_featuremaps.2} parent=5 // pred_check_branch
      %179 = sbr.rel (%p177) target = $region16
    $region15: #{graph_to_featuremaps.2} parent=5 // pred_region
      // Predicated region
      $region17: #{graph_to_featuremaps.2} parent=15 // pred_check
        %p180 = pneg %p43
      $region18: #{graph_to_featuremaps.2} parent=15 // pred_check_branch
        %182 = sbr.rel (%p180) target = $region20
      $region19: #{graph_to_featuremaps.2} parent=15 // pred_region
        %p183 = scmp.lt.s32.totalorder %s18, 1
        %s184 = scalar_select %p183, %s18, 1
        %s185 = smul.addr %s184, 4
        %s186 = scalar_lea.vmem %s0, %s185
      $region20: #{graph_to_featuremaps.2} parent=15 // pred_fallthru
        _
      // Predicated region
      $region21: #{graph_to_featuremaps.2} parent=15 // pred_check
        %p187 = pneg %p71
      $region22: #{graph_to_featuremaps.2} parent=15 // pred_check_branch
        %189 = sbr.rel (%p187) target = $region24
      $region23: #{graph_to_featuremaps.2} parent=15 // pred_region
        %s190 = smul.u32 32, %s19
        %p191 = scmp.lt.s32.totalorder %s18, 1
        %s192 = scalar_select %p191, %s18, 1
        %p193 = scmp.lt.s32.totalorder %s190, 31
        %s194 = scalar_select %p193, %s190, 31
        %s195 = smul.addr %s192, 32
        %s196 = sadd.s32 %s194, %s195
        %s197 = smul.addr %s196, 8
        %s198 = scalar_lea.vmem %s1, %s197
        %s199 = smul.u32 32, %s19
      $region24: #{graph_to_featuremaps.2} parent=15 // pred_fallthru
        _
    $region16: #{graph_to_featuremaps.2} parent=5 // pred_fallthru
      _
    %p200 = scmp.le.s32.totalorder 1, %s11
    %p201 = scmp.lt.s32.totalorder %s11, 3
    %p202 = pnand %p200, %p201
    %p203 = pneg %p202
    // Predicated region
    $region25: #{graph_to_featuremaps.2} parent=5 // pred_check
      _
    $region26: #{graph_to_featuremaps.2} parent=5 // pred_check_branch
      %205 = sbr.rel (%p202) target = $region28
    $region27: #{graph_to_featuremaps.2} parent=5 // pred_region
      %s206 = ssub.s32 %s11, 1
      %p207 = scmp.lt.s32.totalorder %s20, 1
      %s208 = scalar_select %p207, %s20, 1
      %s209 = smul.addr %s208, 4
      %s210 = scalar_lea.vmem %s0, %s209
      %p211 = pneg %p49
      %p212 = pneg %p46
      %s213 = smul.u32 32, %s21
      %p214 = scmp.lt.s32.totalorder %s20, 1
      %s215 = scalar_select %p214, %s20, 1
      %p216 = scmp.lt.s32.totalorder %s213, 31
      %s217 = scalar_select %p216, %s213, 31
      %s218 = smul.addr %s215, 32
      %s219 = sadd.s32 %s217, %s218
      %s220 = smul.addr %s219, 8
      %s221 = scalar_lea.vmem %s1, %s220
      %p222 = pneg %p77
      %p223 = pneg %p74
      %p224 = pneg %p105
      %p225 = pneg %p102
      %s226 = smul.u32 32, %s21
      %p227 = scmp.lt.s32.totalorder %s20, 1
      %s228 = scalar_select %p227, %s20, 1
      %p229 = scmp.lt.s32.totalorder %s226, 31
      %s230 = scalar_select %p229, %s226, 31
      %s231 = smul.addr %s228, 32
      %s232 = sadd.s32 %s230, %s231
      %s233 = smul.addr %s232, 2
      %s234 = scalar_lea.vmem %s2, %s233
      %p235 = pneg %p133
      %p236 = pneg %p130
      %p237 = scmp.lt.s32.totalorder %s20, 1
      %s238 = scalar_select %p237, %s20, 1
      %p239 = scmp.lt.s32.totalorder %s21, 0
      %s240 = scalar_select %p239, %s21, 0
      %s241 = sadd.s32 %s240, %s238
      %s242 = smul.addr %s241, 4
      %s243 = scalar_lea.vmem %s3, %s242
      %p244 = pneg %p161
      %p245 = pneg %p158
      %p246 = scmp.lt.s32.totalorder %s20, 1
      %s247 = scalar_select %p246, %s20, 1
      %p248 = scmp.lt.s32.totalorder %s21, 0
      %s249 = scalar_select %p248, %s21, 0
      %s250 = sadd.s32 %s249, %s247
      %s251 = smul.addr %s250, 4
      %s252 = scalar_lea.vmem %s4, %s251
      %p253 = scmp.lt.s32.totalorder %s20, 1
      %s254 = scalar_select %p253, %s20, 1
      %s255 = smul.addr %s254, 4
      %s256 = scalar_lea.vmem %s0, %s255
      %s257 = smul.u32 32, %s21
      %p258 = scmp.lt.s32.totalorder %s20, 1
      %s259 = scalar_select %p258, %s20, 1
      %p260 = scmp.lt.s32.totalorder %s257, 31
      %s261 = scalar_select %p260, %s257, 31
      %s262 = smul.addr %s259, 32
      %s263 = sadd.s32 %s261, %s262
      %s264 = smul.addr %s263, 8
      %s265 = scalar_lea.vmem %s1, %s264
      %s266 = smul.u32 32, %s21
      %s267 = smul.u32 32, %s21
      %p268 = scmp.lt.s32.totalorder %s20, 1
      %s269 = scalar_select %p268, %s20, 1
      %p270 = scmp.lt.s32.totalorder %s267, 31
      %s271 = scalar_select %p270, %s267, 31
      %s272 = smul.addr %s269, 32
      %s273 = sadd.s32 %s271, %s272
      %s274 = smul.addr %s273, 2
      %s275 = scalar_lea.vmem %s2, %s274
      %s276 = smul.u32 32, %s21
      %p277 = scmp.lt.s32.totalorder %s20, 1
      %s278 = scalar_select %p277, %s20, 1
      %p279 = scmp.lt.s32.totalorder %s21, 0
      %s280 = scalar_select %p279, %s21, 0
      %s281 = sadd.s32 %s280, %s278
      %s282 = smul.addr %s281, 4
      %s283 = scalar_lea.vmem %s3, %s282
      %p284 = scmp.lt.s32.totalorder %s20, 1
      %s285 = scalar_select %p284, %s20, 1
      %p286 = scmp.lt.s32.totalorder %s21, 0
      %s287 = scalar_select %p286, %s21, 0
      %s288 = sadd.s32 %s287, %s285
      %s289 = smul.addr %s288, 4
      %s290 = scalar_lea.vmem %s4, %s289
      %v291 = vld [vmem:[%s265] sm:$0xff]
      %v292 = vld [vmem:[%s265 + $0x8] sm:$0xff]
      %v293 = vld [vmem:[%s265 + $0x10] sm:$0xff]
      %v294 = vld [vmem:[%s265 + $0x18] sm:$0xff]
      %v295 = vld [vmem:[%s265 + $0x20] sm:$0xff]
      %v296 = vld [vmem:[%s265 + $0x28] sm:$0xff]
      %v297 = vld [vmem:[%s265 + $0x30] sm:$0xff]
      %v298 = vld [vmem:[%s265 + $0x38] sm:$0xff]
      %v299 = vld [vmem:[%s265 + $0x40] sm:$0xff]
      %v300 = vld [vmem:[%s265 + $0x48] sm:$0xff]
      %v301 = vld [vmem:[%s265 + $0x50] sm:$0xff]
      %v302 = vld [vmem:[%s265 + $0x58] sm:$0xff]
      %v303 = vld [vmem:[%s265 + $0x60] sm:$0xff]
      %v304 = vld [vmem:[%s265 + $0x68] sm:$0xff]
      %v305 = vld [vmem:[%s265 + $0x70] sm:$0xff]
      %v306 = vld [vmem:[%s265 + $0x78] sm:$0xff]
      %v307 = vld [vmem:[%s265 + $0x80] sm:$0xff]
      %v308 = vld [vmem:[%s265 + $0x88] sm:$0xff]
      %v309 = vld [vmem:[%s265 + $0x90] sm:$0xff]
      %v310 = vld [vmem:[%s265 + $0x98] sm:$0xff]
      %v311 = vld [vmem:[%s265 + $0xa0] sm:$0xff]
      %v312 = vld [vmem:[%s265 + $0xa8] sm:$0xff]
      %v313 = vld [vmem:[%s265 + $0xb0] sm:$0xff]
      %v314 = vld [vmem:[%s265 + $0xb8] sm:$0xff]
      %v315 = vld [vmem:[%s265 + $0xc0] sm:$0xff]
      %v316 = vld [vmem:[%s265 + $0xc8] sm:$0xff]
      %v317 = vld [vmem:[%s265 + $0xd0] sm:$0xff]
      %v318 = vld [vmem:[%s265 + $0xd8] sm:$0xff]
      %v319 = vld [vmem:[%s265 + $0xe0] sm:$0xff]
      %v320 = vld [vmem:[%s265 + $0xe8] sm:$0xff]
      %v321 = vld [vmem:[%s265 + $0xf0] sm:$0xff]
      %v322 = vld [vmem:[%s265 + $0xf8] sm:$0xff]
      %v323 = vrot.slane %v291, 4
      %v324 = vmax.f32 %v291, %v323
      %v325 = vrot.slane %v324, 2
      %v326 = vmax.f32 %v324, %v325
      %v327 = vrot.slane %v326, 1
      %v328 = vmax.f32 %v326, %v327
      %v329 = vrot.slane %v292, 4
      %v330 = vmax.f32 %v292, %v329
      %v331 = vrot.slane %v330, 2
      %v332 = vmax.f32 %v330, %v331
      %v333 = vrot.slane %v332, 1
      %v334 = vmax.f32 %v332, %v333
      %v335 = vrot.slane %v293, 4
      %v336 = vmax.f32 %v293, %v335
      %v337 = vrot.slane %v336, 2
      %v338 = vmax.f32 %v336, %v337
      %v339 = vrot.slane %v338, 1
      %v340 = vmax.f32 %v338, %v339
      %v341 = vrot.slane %v294, 4
      %v342 = vmax.f32 %v294, %v341
      %v343 = vrot.slane %v342, 2
      %v344 = vmax.f32 %v342, %v343
      %v345 = vrot.slane %v344, 1
      %v346 = vmax.f32 %v344, %v345
      %v347 = vrot.slane %v295, 4
      %v348 = vmax.f32 %v295, %v347
      %v349 = vrot.slane %v348, 2
      %v350 = vmax.f32 %v348, %v349
      %v351 = vrot.slane %v350, 1
      %v352 = vmax.f32 %v350, %v351
      %v353 = vrot.slane %v296, 4
      %v354 = vmax.f32 %v296, %v353
      %v355 = vrot.slane %v354, 2
      %v356 = vmax.f32 %v354, %v355
      %v357 = vrot.slane %v356, 1
      %v358 = vmax.f32 %v356, %v357
      %v359 = vrot.slane %v297, 4
      %v360 = vmax.f32 %v297, %v359
      %v361 = vrot.slane %v360, 2
      %v362 = vmax.f32 %v360, %v361
      %v363 = vrot.slane %v362, 1
      %v364 = vmax.f32 %v362, %v363
      %v365 = vrot.slane %v298, 4
      %v366 = vmax.f32 %v298, %v365
      %v367 = vrot.slane %v366, 2
      %v368 = vmax.f32 %v366, %v367
      %v369 = vrot.slane %v368, 1
      %v370 = vmax.f32 %v368, %v369
      %v371 = vrot.slane %v299, 4
      %v372 = vmax.f32 %v299, %v371
      %v373 = vrot.slane %v372, 2
      %v374 = vmax.f32 %v372, %v373
      %v375 = vrot.slane %v374, 1
      %v376 = vmax.f32 %v374, %v375
      %v377 = vrot.slane %v300, 4
      %v378 = vmax.f32 %v300, %v377
      %v379 = vrot.slane %v378, 2
      %v380 = vmax.f32 %v378, %v379
      %v381 = vrot.slane %v380, 1
      %v382 = vmax.f32 %v380, %v381
      %v383 = vrot.slane %v301, 4
      %v384 = vmax.f32 %v301, %v383
      %v385 = vrot.slane %v384, 2
      %v386 = vmax.f32 %v384, %v385
      %v387 = vrot.slane %v386, 1
      %v388 = vmax.f32 %v386, %v387
      %v389 = vrot.slane %v302, 4
      %v390 = vmax.f32 %v302, %v389
      %v391 = vrot.slane %v390, 2
      %v392 = vmax.f32 %v390, %v391
      %v393 = vrot.slane %v392, 1
      %v394 = vmax.f32 %v392, %v393
      %v395 = vrot.slane %v303, 4
      %v396 = vmax.f32 %v303, %v395
      %v397 = vrot.slane %v396, 2
      %v398 = vmax.f32 %v396, %v397
      %v399 = vrot.slane %v398, 1
      %v400 = vmax.f32 %v398, %v399
      %v401 = vrot.slane %v304, 4
      %v402 = vmax.f32 %v304, %v401
      %v403 = vrot.slane %v402, 2
      %v404 = vmax.f32 %v402, %v403
      %v405 = vrot.slane %v404, 1
      %v406 = vmax.f32 %v404, %v405
      %v407 = vrot.slane %v305, 4
      %v408 = vmax.f32 %v305, %v407
      %v409 = vrot.slane %v408, 2
      %v410 = vmax.f32 %v408, %v409
      %v411 = vrot.slane %v410, 1
      %v412 = vmax.f32 %v410, %v411
      %v413 = vrot.slane %v306, 4
      %v414 = vmax.f32 %v306, %v413
      %v415 = vrot.slane %v414, 2
      %v416 = vmax.f32 %v414, %v415
      %v417 = vrot.slane %v416, 1
      %v418 = vmax.f32 %v416, %v417
      %v419 = vrot.slane %v307, 4
      %v420 = vmax.f32 %v307, %v419
      %v421 = vrot.slane %v420, 2
      %v422 = vmax.f32 %v420, %v421
      %v423 = vrot.slane %v422, 1
      %v424 = vmax.f32 %v422, %v423
      %v425 = vrot.slane %v308, 4
      %v426 = vmax.f32 %v308, %v425
      %v427 = vrot.slane %v426, 2
      %v428 = vmax.f32 %v426, %v427
      %v429 = vrot.slane %v428, 1
      %v430 = vmax.f32 %v428, %v429
      %v431 = vrot.slane %v309, 4
      %v432 = vmax.f32 %v309, %v431
      %v433 = vrot.slane %v432, 2
      %v434 = vmax.f32 %v432, %v433
      %v435 = vrot.slane %v434, 1
      %v436 = vmax.f32 %v434, %v435
      %v437 = vrot.slane %v310, 4
      %v438 = vmax.f32 %v310, %v437
      %v439 = vrot.slane %v438, 2
      %v440 = vmax.f32 %v438, %v439
      %v441 = vrot.slane %v440, 1
      %v442 = vmax.f32 %v440, %v441
      %v443 = vrot.slane %v311, 4
      %v444 = vmax.f32 %v311, %v443
      %v445 = vrot.slane %v444, 2
      %v446 = vmax.f32 %v444, %v445
      %v447 = vrot.slane %v446, 1
      %v448 = vmax.f32 %v446, %v447
      %v449 = vrot.slane %v312, 4
      %v450 = vmax.f32 %v312, %v449
      %v451 = vrot.slane %v450, 2
      %v452 = vmax.f32 %v450, %v451
      %v453 = vrot.slane %v452, 1
      %v454 = vmax.f32 %v452, %v453
      %v455 = vrot.slane %v313, 4
      %v456 = vmax.f32 %v313, %v455
      %v457 = vrot.slane %v456, 2
      %v458 = vmax.f32 %v456, %v457
      %v459 = vrot.slane %v458, 1
      %v460 = vmax.f32 %v458, %v459
      %v461 = vrot.slane %v314, 4
      %v462 = vmax.f32 %v314, %v461
      %v463 = vrot.slane %v462, 2
      %v464 = vmax.f32 %v462, %v463
      %v465 = vrot.slane %v464, 1
      %v466 = vmax.f32 %v464, %v465
      %v467 = vrot.slane %v315, 4
      %v468 = vmax.f32 %v315, %v467
      %v469 = vrot.slane %v468, 2
      %v470 = vmax.f32 %v468, %v469
      %v471 = vrot.slane %v470, 1
      %v472 = vmax.f32 %v470, %v471
      %v473 = vrot.slane %v316, 4
      %v474 = vmax.f32 %v316, %v473
      %v475 = vrot.slane %v474, 2
      %v476 = vmax.f32 %v474, %v475
      %v477 = vrot.slane %v476, 1
      %v478 = vmax.f32 %v476, %v477
      %v479 = vrot.slane %v317, 4
      %v480 = vmax.f32 %v317, %v479
      %v481 = vrot.slane %v480, 2
      %v482 = vmax.f32 %v480, %v481
      %v483 = vrot.slane %v482, 1
      %v484 = vmax.f32 %v482, %v483
      %v485 = vrot.slane %v318, 4
      %v486 = vmax.f32 %v318, %v485
      %v487 = vrot.slane %v486, 2
      %v488 = vmax.f32 %v486, %v487
      %v489 = vrot.slane %v488, 1
      %v490 = vmax.f32 %v488, %v489
      %v491 = vrot.slane %v319, 4
      %v492 = vmax.f32 %v319, %v491
      %v493 = vrot.slane %v492, 2
      %v494 = vmax.f32 %v492, %v493
      %v495 = vrot.slane %v494, 1
      %v496 = vmax.f32 %v494, %v495
      %v497 = vrot.slane %v320, 4
      %v498 = vmax.f32 %v320, %v497
      %v499 = vrot.slane %v498, 2
      %v500 = vmax.f32 %v498, %v499
      %v501 = vrot.slane %v500, 1
      %v502 = vmax.f32 %v500, %v501
      %v503 = vrot.slane %v321, 4
      %v504 = vmax.f32 %v321, %v503
      %v505 = vrot.slane %v504, 2
      %v506 = vmax.f32 %v504, %v505
      %v507 = vrot.slane %v506, 1
      %v508 = vmax.f32 %v506, %v507
      %v509 = vrot.slane %v322, 4
      %v510 = vmax.f32 %v322, %v509
      %v511 = vrot.slane %v510, 2
      %v512 = vmax.f32 %v510, %v511
      %v513 = vrot.slane %v512, 1
      %v514 = vmax.f32 %v512, %v513
      %v515 = vsub.f32 %v291, %v328
      %v516 = vsub.f32 %v292, %v334
      %v517 = vsub.f32 %v293, %v340
      %v518 = vsub.f32 %v294, %v346
      %v519 = vsub.f32 %v295, %v352
      %v520 = vsub.f32 %v296, %v358
      %v521 = vsub.f32 %v297, %v364
      %v522 = vsub.f32 %v298, %v370
      %v523 = vsub.f32 %v299, %v376
      %v524 = vsub.f32 %v300, %v382
      %v525 = vsub.f32 %v301, %v388
      %v526 = vsub.f32 %v302, %v394
      %v527 = vsub.f32 %v303, %v400
      %v528 = vsub.f32 %v304, %v406
      %v529 = vsub.f32 %v305, %v412
      %v530 = vsub.f32 %v306, %v418
      %v531 = vsub.f32 %v307, %v424
      %v532 = vsub.f32 %v308, %v430
      %v533 = vsub.f32 %v309, %v436
      %v534 = vsub.f32 %v310, %v442
      %v535 = vsub.f32 %v311, %v448
      %v536 = vsub.f32 %v312, %v454
      %v537 = vsub.f32 %v313, %v460
      %v538 = vsub.f32 %v314, %v466
      %v539 = vsub.f32 %v315, %v472
      %v540 = vsub.f32 %v316, %v478
      %v541 = vsub.f32 %v317, %v484
      %v542 = vsub.f32 %v318, %v490
      %v543 = vsub.f32 %v319, %v496
      %v544 = vsub.f32 %v320, %v502
      %v545 = vsub.f32 %v321, %v508
      %v546 = vsub.f32 %v322, %v514
      %v547 = vmul.f32 %v515, 1.442695
      %v548 = vpow.pop %v547
      %v549 = vmul.f32 %v516, 1.442695
      %v550 = vpow.pop %v549
      %v551 = vmul.f32 %v517, 1.442695
      %v552 = vpow.pop %v551
      %v553 = vmul.f32 %v518, 1.442695
      %v554 = vpow.pop %v553
      %v555 = vmul.f32 %v519, 1.442695
      %v556 = vpow.pop %v555
      %v557 = vmul.f32 %v520, 1.442695
      %v558 = vpow.pop %v557
      %v559 = vmul.f32 %v521, 1.442695
      %v560 = vpow.pop %v559
      %v561 = vmul.f32 %v522, 1.442695
      %v562 = vpow.pop %v561
      %v563 = vmul.f32 %v523, 1.442695
      %v564 = vpow.pop %v563
      %v565 = vmul.f32 %v524, 1.442695
      %v566 = vpow.pop %v565
      %v567 = vmul.f32 %v525, 1.442695
      %v568 = vpow.pop %v567
      %v569 = vmul.f32 %v526, 1.442695
      %v570 = vpow.pop %v569
      %v571 = vmul.f32 %v527, 1.442695
      %v572 = vpow.pop %v571
      %v573 = vmul.f32 %v528, 1.442695
      %v574 = vpow.pop %v573
      %v575 = vmul.f32 %v529, 1.442695
      %v576 = vpow.pop %v575
      %v577 = vmul.f32 %v530, 1.442695
      %v578 = vpow.pop %v577
      %v579 = vmul.f32 %v531, 1.442695
      %v580 = vpow.pop %v579
      %v581 = vmul.f32 %v532, 1.442695
      %v582 = vpow.pop %v581
      %v583 = vmul.f32 %v533, 1.442695
      %v584 = vpow.pop %v583
      %v585 = vmul.f32 %v534, 1.442695
      %v586 = vpow.pop %v585
      %v587 = vmul.f32 %v535, 1.442695
      %v588 = vpow.pop %v587
      %v589 = vmul.f32 %v536, 1.442695
      %v590 = vpow.pop %v589
      %v591 = vmul.f32 %v537, 1.442695
      %v592 = vpow.pop %v591
      %v593 = vmul.f32 %v538, 1.442695
      %v594 = vpow.pop %v593
      %v595 = vmul.f32 %v539, 1.442695
      %v596 = vpow.pop %v595
      %v597 = vmul.f32 %v540, 1.442695
      %v598 = vpow.pop %v597
      %v599 = vmul.f32 %v541, 1.442695
      %v600 = vpow.pop %v599
      %v601 = vmul.f32 %v542, 1.442695
      %v602 = vpow.pop %v601
      %v603 = vmul.f32 %v543, 1.442695
      %v604 = vpow.pop %v603
      %v605 = vmul.f32 %v544, 1.442695
      %v606 = vpow.pop %v605
      %v607 = vmul.f32 %v545, 1.442695
      %v608 = vpow.pop %v607
      %v609 = vmul.f32 %v546, 1.442695
      %v610 = vpow.pop %v609
      %v611 = vrot.slane %v548, 4
      %v612 = vadd.f32 %v548, %v611
      %v613 = vrot.slane %v612, 2
      %v614 = vadd.f32 %v612, %v613
      %v615 = vrot.slane %v614, 1
      %v616 = vadd.f32 %v614, %v615
      %v617 = vrot.slane %v550, 4
      %v618 = vadd.f32 %v550, %v617
      %v619 = vrot.slane %v618, 2
      %v620 = vadd.f32 %v618, %v619
      %v621 = vrot.slane %v620, 1
      %v622 = vadd.f32 %v620, %v621
      %v623 = vrot.slane %v552, 4
      %v624 = vadd.f32 %v552, %v623
      %v625 = vrot.slane %v624, 2
      %v626 = vadd.f32 %v624, %v625
      %v627 = vrot.slane %v626, 1
      %v628 = vadd.f32 %v626, %v627
      %v629 = vrot.slane %v554, 4
      %v630 = vadd.f32 %v554, %v629
      %v631 = vrot.slane %v630, 2
      %v632 = vadd.f32 %v630, %v631
      %v633 = vrot.slane %v632, 1
      %v634 = vadd.f32 %v632, %v633
      %v635 = vrot.slane %v556, 4
      %v636 = vadd.f32 %v556, %v635
      %v637 = vrot.slane %v636, 2
      %v638 = vadd.f32 %v636, %v637
      %v639 = vrot.slane %v638, 1
      %v640 = vadd.f32 %v638, %v639
      %v641 = vrot.slane %v558, 4
      %v642 = vadd.f32 %v558, %v641
      %v643 = vrot.slane %v642, 2
      %v644 = vadd.f32 %v642, %v643
      %v645 = vrot.slane %v644, 1
      %v646 = vadd.f32 %v644, %v645
      %v647 = vrot.slane %v560, 4
      %v648 = vadd.f32 %v560, %v647
      %v649 = vrot.slane %v648, 2
      %v650 = vadd.f32 %v648, %v649
      %v651 = vrot.slane %v650, 1
      %v652 = vadd.f32 %v650, %v651
      %v653 = vrot.slane %v562, 4
      %v654 = vadd.f32 %v562, %v653
      %v655 = vrot.slane %v654, 2
      %v656 = vadd.f32 %v654, %v655
      %v657 = vrot.slane %v656, 1
      %v658 = vadd.f32 %v656, %v657
      %v659 = vrot.slane %v564, 4
      %v660 = vadd.f32 %v564, %v659
      %v661 = vrot.slane %v660, 2
      %v662 = vadd.f32 %v660, %v661
      %v663 = vrot.slane %v662, 1
      %v664 = vadd.f32 %v662, %v663
      %v665 = vrot.slane %v566, 4
      %v666 = vadd.f32 %v566, %v665
      %v667 = vrot.slane %v666, 2
      %v668 = vadd.f32 %v666, %v667
      %v669 = vrot.slane %v668, 1
      %v670 = vadd.f32 %v668, %v669
      %v671 = vrot.slane %v568, 4
      %v672 = vadd.f32 %v568, %v671
      %v673 = vrot.slane %v672, 2
      %v674 = vadd.f32 %v672, %v673
      %v675 = vrot.slane %v674, 1
      %v676 = vadd.f32 %v674, %v675
      %v677 = vrot.slane %v570, 4
      %v678 = vadd.f32 %v570, %v677
      %v679 = vrot.slane %v678, 2
      %v680 = vadd.f32 %v678, %v679
      %v681 = vrot.slane %v680, 1
      %v682 = vadd.f32 %v680, %v681
      %v683 = vrot.slane %v572, 4
      %v684 = vadd.f32 %v572, %v683
      %v685 = vrot.slane %v684, 2
      %v686 = vadd.f32 %v684, %v685
      %v687 = vrot.slane %v686, 1
      %v688 = vadd.f32 %v686, %v687
      %v689 = vrot.slane %v574, 4
      %v690 = vadd.f32 %v574, %v689
      %v691 = vrot.slane %v690, 2
      %v692 = vadd.f32 %v690, %v691
      %v693 = vrot.slane %v692, 1
      %v694 = vadd.f32 %v692, %v693
      %v695 = vrot.slane %v576, 4
      %v696 = vadd.f32 %v576, %v695
      %v697 = vrot.slane %v696, 2
      %v698 = vadd.f32 %v696, %v697
      %v699 = vrot.slane %v698, 1
      %v700 = vadd.f32 %v698, %v699
      %v701 = vrot.slane %v578, 4
      %v702 = vadd.f32 %v578, %v701
      %v703 = vrot.slane %v702, 2
      %v704 = vadd.f32 %v702, %v703
      %v705 = vrot.slane %v704, 1
      %v706 = vadd.f32 %v704, %v705
      %v707 = vrot.slane %v580, 4
      %v708 = vadd.f32 %v580, %v707
      %v709 = vrot.slane %v708, 2
      %v710 = vadd.f32 %v708, %v709
      %v711 = vrot.slane %v710, 1
      %v712 = vadd.f32 %v710, %v711
      %v713 = vrot.slane %v582, 4
      %v714 = vadd.f32 %v582, %v713
      %v715 = vrot.slane %v714, 2
      %v716 = vadd.f32 %v714, %v715
      %v717 = vrot.slane %v716, 1
      %v718 = vadd.f32 %v716, %v717
      %v719 = vrot.slane %v584, 4
      %v720 = vadd.f32 %v584, %v719
      %v721 = vrot.slane %v720, 2
      %v722 = vadd.f32 %v720, %v721
      %v723 = vrot.slane %v722, 1
      %v724 = vadd.f32 %v722, %v723
      %v725 = vrot.slane %v586, 4
      %v726 = vadd.f32 %v586, %v725
      %v727 = vrot.slane %v726, 2
      %v728 = vadd.f32 %v726, %v727
      %v729 = vrot.slane %v728, 1
      %v730 = vadd.f32 %v728, %v729
      %v731 = vrot.slane %v588, 4
      %v732 = vadd.f32 %v588, %v731
      %v733 = vrot.slane %v732, 2
      %v734 = vadd.f32 %v732, %v733
      %v735 = vrot.slane %v734, 1
      %v736 = vadd.f32 %v734, %v735
      %v737 = vrot.slane %v590, 4
      %v738 = vadd.f32 %v590, %v737
      %v739 = vrot.slane %v738, 2
      %v740 = vadd.f32 %v738, %v739
      %v741 = vrot.slane %v740, 1
      %v742 = vadd.f32 %v740, %v741
      %v743 = vrot.slane %v592, 4
      %v744 = vadd.f32 %v592, %v743
      %v745 = vrot.slane %v744, 2
      %v746 = vadd.f32 %v744, %v745
      %v747 = vrot.slane %v746, 1
      %v748 = vadd.f32 %v746, %v747
      %v749 = vrot.slane %v594, 4
      %v750 = vadd.f32 %v594, %v749
      %v751 = vrot.slane %v750, 2
      %v752 = vadd.f32 %v750, %v751
      %v753 = vrot.slane %v752, 1
      %v754 = vadd.f32 %v752, %v753
      %v755 = vrot.slane %v596, 4
      %v756 = vadd.f32 %v596, %v755
      %v757 = vrot.slane %v756, 2
      %v758 = vadd.f32 %v756, %v757
      %v759 = vrot.slane %v758, 1
      %v760 = vadd.f32 %v758, %v759
      %v761 = vrot.slane %v598, 4
      %v762 = vadd.f32 %v598, %v761
      %v763 = vrot.slane %v762, 2
      %v764 = vadd.f32 %v762, %v763
      %v765 = vrot.slane %v764, 1
      %v766 = vadd.f32 %v764, %v765
      %v767 = vrot.slane %v600, 4
      %v768 = vadd.f32 %v600, %v767
      %v769 = vrot.slane %v768, 2
      %v770 = vadd.f32 %v768, %v769
      %v771 = vrot.slane %v770, 1
      %v772 = vadd.f32 %v770, %v771
      %v773 = vrot.slane %v602, 4
      %v774 = vadd.f32 %v602, %v773
      %v775 = vrot.slane %v774, 2
      %v776 = vadd.f32 %v774, %v775
      %v777 = vrot.slane %v776, 1
      %v778 = vadd.f32 %v776, %v777
      %v779 = vrot.slane %v604, 4
      %v780 = vadd.f32 %v604, %v779
      %v781 = vrot.slane %v780, 2
      %v782 = vadd.f32 %v780, %v781
      %v783 = vrot.slane %v782, 1
      %v784 = vadd.f32 %v782, %v783
      %v785 = vrot.slane %v606, 4
      %v786 = vadd.f32 %v606, %v785
      %v787 = vrot.slane %v786, 2
      %v788 = vadd.f32 %v786, %v787
      %v789 = vrot.slane %v788, 1
      %v790 = vadd.f32 %v788, %v789
      %v791 = vrot.slane %v608, 4
      %v792 = vadd.f32 %v608, %v791
      %v793 = vrot.slane %v792, 2
      %v794 = vadd.f32 %v792, %v793
      %v795 = vrot.slane %v794, 1
      %v796 = vadd.f32 %v794, %v795
      %v797 = vrot.slane %v610, 4
      %v798 = vadd.f32 %v610, %v797
      %v799 = vrot.slane %v798, 2
      %v800 = vadd.f32 %v798, %v799
      %v801 = vrot.slane %v800, 1
      %v802 = vadd.f32 %v800, %v801
      %v803 = vrcp.pop %v616
      %v804 = vrcp.pop %v622
      %v805 = vrcp.pop %v628
      %v806 = vrcp.pop %v634
      %v807 = vrcp.pop %v640
      %v808 = vrcp.pop %v646
      %v809 = vrcp.pop %v652
      %v810 = vrcp.pop %v658
      %v811 = vrcp.pop %v664
      %v812 = vrcp.pop %v670
      %v813 = vrcp.pop %v676
      %v814 = vrcp.pop %v682
      %v815 = vrcp.pop %v688
      %v816 = vrcp.pop %v694
      %v817 = vrcp.pop %v700
      %v818 = vrcp.pop %v706
      %v819 = vrcp.pop %v712
      %v820 = vrcp.pop %v718
      %v821 = vrcp.pop %v724
      %v822 = vrcp.pop %v730
      %v823 = vrcp.pop %v736
      %v824 = vrcp.pop %v742
      %v825 = vrcp.pop %v748
      %v826 = vrcp.pop %v754
      %v827 = vrcp.pop %v760
      %v828 = vrcp.pop %v766
      %v829 = vrcp.pop %v772
      %v830 = vrcp.pop %v778
      %v831 = vrcp.pop %v784
      %v832 = vrcp.pop %v790
      %v833 = vrcp.pop %v796
      %v834 = vrcp.pop %v802
      %v835 = vld [vmem:[%s256] sm:$0xf]
      %837 = vset.pattern.permute.xlu0 0
      %838 = vperm.xlu0 %837, %v835
      %v839 = vpop.permute.xlu0 %838
      %v841 = vlaneseq
      %v842 = vshrl.u32 %v841, 7
      %v843 = vsub.s32 0, %v842
      %v844 = vrot.slane %v548, %v843
      %v845 = vlaneseq
      %v846 = vshrl.u32 %v845, 7
      %v847 = vsub.s32 0, %v846
      %v848 = vrot.slane %v550, %v847
      %v849 = vlaneseq
      %v850 = vshrl.u32 %v849, 7
      %v851 = vsub.s32 0, %v850
      %v852 = vrot.slane %v552, %v851
      %v853 = vlaneseq
      %v854 = vshrl.u32 %v853, 7
      %v855 = vsub.s32 0, %v854
      %v856 = vrot.slane %v554, %v855
      %v857 = vlaneseq
      %v858 = vshrl.u32 %v857, 7
      %v859 = vsub.s32 0, %v858
      %v860 = vrot.slane %v556, %v859
      %v861 = vlaneseq
      %v862 = vshrl.u32 %v861, 7
      %v863 = vsub.s32 0, %v862
      %v864 = vrot.slane %v558, %v863
      %v865 = vlaneseq
      %v866 = vshrl.u32 %v865, 7
      %v867 = vsub.s32 0, %v866
      %v868 = vrot.slane %v560, %v867
      %v869 = vlaneseq
      %v870 = vshrl.u32 %v869, 7
      %v871 = vsub.s32 0, %v870
      %v872 = vrot.slane %v562, %v871
      %v873 = vlaneseq
      %v874 = vshrl.u32 %v873, 7
      %v875 = vsub.s32 0, %v874
      %v876 = vrot.slane %v564, %v875
      %v877 = vlaneseq
      %v878 = vshrl.u32 %v877, 7
      %v879 = vsub.s32 0, %v878
      %v880 = vrot.slane %v566, %v879
      %v881 = vlaneseq
      %v882 = vshrl.u32 %v881, 7
      %v883 = vsub.s32 0, %v882
      %v884 = vrot.slane %v568, %v883
      %v885 = vlaneseq
      %v886 = vshrl.u32 %v885, 7
      %v887 = vsub.s32 0, %v886
      %v888 = vrot.slane %v570, %v887
      %v889 = vlaneseq
      %v890 = vshrl.u32 %v889, 7
      %v891 = vsub.s32 0, %v890
      %v892 = vrot.slane %v572, %v891
      %v893 = vlaneseq
      %v894 = vshrl.u32 %v893, 7
      %v895 = vsub.s32 0, %v894
      %v896 = vrot.slane %v574, %v895
      %v897 = vlaneseq
      %v898 = vshrl.u32 %v897, 7
      %v899 = vsub.s32 0, %v898
      %v900 = vrot.slane %v576, %v899
      %v901 = vlaneseq
      %v902 = vshrl.u32 %v901, 7
      %v903 = vsub.s32 0, %v902
      %v904 = vrot.slane %v578, %v903
      %v905 = vlaneseq
      %v906 = vshrl.u32 %v905, 7
      %v907 = vsub.s32 0, %v906
      %v908 = vrot.slane %v580, %v907
      %v909 = vlaneseq
      %v910 = vshrl.u32 %v909, 7
      %v911 = vsub.s32 0, %v910
      %v912 = vrot.slane %v582, %v911
      %v913 = vlaneseq
      %v914 = vshrl.u32 %v913, 7
      %v915 = vsub.s32 0, %v914
      %v916 = vrot.slane %v584, %v915
      %v917 = vlaneseq
      %v918 = vshrl.u32 %v917, 7
      %v919 = vsub.s32 0, %v918
      %v920 = vrot.slane %v586, %v919
      %v921 = vlaneseq
      %v922 = vshrl.u32 %v921, 7
      %v923 = vsub.s32 0, %v922
      %v924 = vrot.slane %v588, %v923
      %v925 = vlaneseq
      %v926 = vshrl.u32 %v925, 7
      %v927 = vsub.s32 0, %v926
      %v928 = vrot.slane %v590, %v927
      %v929 = vlaneseq
      %v930 = vshrl.u32 %v929, 7
      %v931 = vsub.s32 0, %v930
      %v932 = vrot.slane %v592, %v931
      %v933 = vlaneseq
      %v934 = vshrl.u32 %v933, 7
      %v935 = vsub.s32 0, %v934
      %v936 = vrot.slane %v594, %v935
      %v937 = vlaneseq
      %v938 = vshrl.u32 %v937, 7
      %v939 = vsub.s32 0, %v938
      %v940 = vrot.slane %v596, %v939
      %v941 = vlaneseq
      %v942 = vshrl.u32 %v941, 7
      %v943 = vsub.s32 0, %v942
      %v944 = vrot.slane %v598, %v943
      %v945 = vlaneseq
      %v946 = vshrl.u32 %v945, 7
      %v947 = vsub.s32 0, %v946
      %v948 = vrot.slane %v600, %v947
      %v949 = vlaneseq
      %v950 = vshrl.u32 %v949, 7
      %v951 = vsub.s32 0, %v950
      %v952 = vrot.slane %v602, %v951
      %v953 = vlaneseq
      %v954 = vshrl.u32 %v953, 7
      %v955 = vsub.s32 0, %v954
      %v956 = vrot.slane %v604, %v955
      %v957 = vlaneseq
      %v958 = vshrl.u32 %v957, 7
      %v959 = vsub.s32 0, %v958
      %v960 = vrot.slane %v606, %v959
      %v961 = vlaneseq
      %v962 = vshrl.u32 %v961, 7
      %v963 = vsub.s32 0, %v962
      %v964 = vrot.slane %v608, %v963
      %v965 = vlaneseq
      %v966 = vshrl.u32 %v965, 7
      %v967 = vsub.s32 0, %v966
      %v968 = vrot.slane %v610, %v967
      %v969 = vmul.f32 %v839, %v844
      %v970 = vmul.f32 %v839, %v848
      %v971 = vmul.f32 %v839, %v852
      %v972 = vmul.f32 %v839, %v856
      %v973 = vmul.f32 %v839, %v860
      %v974 = vmul.f32 %v839, %v864
      %v975 = vmul.f32 %v839, %v868
      %v976 = vmul.f32 %v839, %v872
      %v977 = vmul.f32 %v839, %v876
      %v978 = vmul.f32 %v839, %v880
      %v979 = vmul.f32 %v839, %v884
      %v980 = vmul.f32 %v839, %v888
      %v981 = vmul.f32 %v839, %v892
      %v982 = vmul.f32 %v839, %v896
      %v983 = vmul.f32 %v839, %v900
      %v984 = vmul.f32 %v839, %v904
      %v985 = vmul.f32 %v839, %v908
      %v986 = vmul.f32 %v839, %v912
      %v987 = vmul.f32 %v839, %v916
      %v988 = vmul.f32 %v839, %v920
      %v989 = vmul.f32 %v839, %v924
      %v990 = vmul.f32 %v839, %v928
      %v991 = vmul.f32 %v839, %v932
      %v992 = vmul.f32 %v839, %v936
      %v993 = vmul.f32 %v839, %v940
      %v994 = vmul.f32 %v839, %v944
      %v995 = vmul.f32 %v839, %v948
      %v996 = vmul.f32 %v839, %v952
      %v997 = vmul.f32 %v839, %v956
      %v998 = vmul.f32 %v839, %v960
      %v999 = vmul.f32 %v839, %v964
      %v1000 = vmul.f32 %v839, %v968
      %1001 = vset.pattern.permute.xlu0 1
      %1002 = vperm.xlu0 %1001, %v835
      %v1003 = vpop.permute.xlu0 %1002
      %v1005 = vlaneseq
      %v1006 = vshrl.u32 %v1005, 7
      %v1007 = vsub.s32 1, %v1006
      %v1008 = vrot.slane %v548, %v1007
      %v1009 = vlaneseq
      %v1010 = vshrl.u32 %v1009, 7
      %v1011 = vsub.s32 1, %v1010
      %v1012 = vrot.slane %v550, %v1011
      %v1013 = vlaneseq
      %v1014 = vshrl.u32 %v1013, 7
      %v1015 = vsub.s32 1, %v1014
      %v1016 = vrot.slane %v552, %v1015
      %v1017 = vlaneseq
      %v1018 = vshrl.u32 %v1017, 7
      %v1019 = vsub.s32 1, %v1018
      %v1020 = vrot.slane %v554, %v1019
      %v1021 = vlaneseq
      %v1022 = vshrl.u32 %v1021, 7
      %v1023 = vsub.s32 1, %v1022
      %v1024 = vrot.slane %v556, %v1023
      %v1025 = vlaneseq
      %v1026 = vshrl.u32 %v1025, 7
      %v1027 = vsub.s32 1, %v1026
      %v1028 = vrot.slane %v558, %v1027
      %v1029 = vlaneseq
      %v1030 = vshrl.u32 %v1029, 7
      %v1031 = vsub.s32 1, %v1030
      %v1032 = vrot.slane %v560, %v1031
      %v1033 = vlaneseq
      %v1034 = vshrl.u32 %v1033, 7
      %v1035 = vsub.s32 1, %v1034
      %v1036 = vrot.slane %v562, %v1035
      %v1037 = vlaneseq
      %v1038 = vshrl.u32 %v1037, 7
      %v1039 = vsub.s32 1, %v1038
      %v1040 = vrot.slane %v564, %v1039
      %v1041 = vlaneseq
      %v1042 = vshrl.u32 %v1041, 7
      %v1043 = vsub.s32 1, %v1042
      %v1044 = vrot.slane %v566, %v1043
      %v1045 = vlaneseq
      %v1046 = vshrl.u32 %v1045, 7
      %v1047 = vsub.s32 1, %v1046
      %v1048 = vrot.slane %v568, %v1047
      %v1049 = vlaneseq
      %v1050 = vshrl.u32 %v1049, 7
      %v1051 = vsub.s32 1, %v1050
      %v1052 = vrot.slane %v570, %v1051
      %v1053 = vlaneseq
      %v1054 = vshrl.u32 %v1053, 7
      %v1055 = vsub.s32 1, %v1054
      %v1056 = vrot.slane %v572, %v1055
      %v1057 = vlaneseq
      %v1058 = vshrl.u32 %v1057, 7
      %v1059 = vsub.s32 1, %v1058
      %v1060 = vrot.slane %v574, %v1059
      %v1061 = vlaneseq
      %v1062 = vshrl.u32 %v1061, 7
      %v1063 = vsub.s32 1, %v1062
      %v1064 = vrot.slane %v576, %v1063
      %v1065 = vlaneseq
      %v1066 = vshrl.u32 %v1065, 7
      %v1067 = vsub.s32 1, %v1066
      %v1068 = vrot.slane %v578, %v1067
      %v1069 = vlaneseq
      %v1070 = vshrl.u32 %v1069, 7
      %v1071 = vsub.s32 1, %v1070
      %v1072 = vrot.slane %v580, %v1071
      %v1073 = vlaneseq
      %v1074 = vshrl.u32 %v1073, 7
      %v1075 = vsub.s32 1, %v1074
      %v1076 = vrot.slane %v582, %v1075
      %v1077 = vlaneseq
      %v1078 = vshrl.u32 %v1077, 7
      %v1079 = vsub.s32 1, %v1078
      %v1080 = vrot.slane %v584, %v1079
      %v1081 = vlaneseq
      %v1082 = vshrl.u32 %v1081, 7
      %v1083 = vsub.s32 1, %v1082
      %v1084 = vrot.slane %v586, %v1083
      %v1085 = vlaneseq
      %v1086 = vshrl.u32 %v1085, 7
      %v1087 = vsub.s32 1, %v1086
      %v1088 = vrot.slane %v588, %v1087
      %v1089 = vlaneseq
      %v1090 = vshrl.u32 %v1089, 7
      %v1091 = vsub.s32 1, %v1090
      %v1092 = vrot.slane %v590, %v1091
      %v1093 = vlaneseq
      %v1094 = vshrl.u32 %v1093, 7
      %v1095 = vsub.s32 1, %v1094
      %v1096 = vrot.slane %v592, %v1095
      %v1097 = vlaneseq
      %v1098 = vshrl.u32 %v1097, 7
      %v1099 = vsub.s32 1, %v1098
      %v1100 = vrot.slane %v594, %v1099
      %v1101 = vlaneseq
      %v1102 = vshrl.u32 %v1101, 7
      %v1103 = vsub.s32 1, %v1102
      %v1104 = vrot.slane %v596, %v1103
      %v1105 = vlaneseq
      %v1106 = vshrl.u32 %v1105, 7
      %v1107 = vsub.s32 1, %v1106
      %v1108 = vrot.slane %v598, %v1107
      %v1109 = vlaneseq
      %v1110 = vshrl.u32 %v1109, 7
      %v1111 = vsub.s32 1, %v1110
      %v1112 = vrot.slane %v600, %v1111
      %v1113 = vlaneseq
      %v1114 = vshrl.u32 %v1113, 7
      %v1115 = vsub.s32 1, %v1114
      %v1116 = vrot.slane %v602, %v1115
      %v1117 = vlaneseq
      %v1118 = vshrl.u32 %v1117, 7
      %v1119 = vsub.s32 1, %v1118
      %v1120 = vrot.slane %v604, %v1119
      %v1121 = vlaneseq
      %v1122 = vshrl.u32 %v1121, 7
      %v1123 = vsub.s32 1, %v1122
      %v1124 = vrot.slane %v606, %v1123
      %v1125 = vlaneseq
      %v1126 = vshrl.u32 %v1125, 7
      %v1127 = vsub.s32 1, %v1126
      %v1128 = vrot.slane %v608, %v1127
      %v1129 = vlaneseq
      %v1130 = vshrl.u32 %v1129, 7
      %v1131 = vsub.s32 1, %v1130
      %v1132 = vrot.slane %v610, %v1131
      %v1133 = vmul.f32 %v1003, %v1008
      %v1134 = vmul.f32 %v1003, %v1012
      %v1135 = vmul.f32 %v1003, %v1016
      %v1136 = vmul.f32 %v1003, %v1020
      %v1137 = vmul.f32 %v1003, %v1024
      %v1138 = vmul.f32 %v1003, %v1028
      %v1139 = vmul.f32 %v1003, %v1032
      %v1140 = vmul.f32 %v1003, %v1036
      %v1141 = vmul.f32 %v1003, %v1040
      %v1142 = vmul.f32 %v1003, %v1044
      %v1143 = vmul.f32 %v1003, %v1048
      %v1144 = vmul.f32 %v1003, %v1052
      %v1145 = vmul.f32 %v1003, %v1056
      %v1146 = vmul.f32 %v1003, %v1060
      %v1147 = vmul.f32 %v1003, %v1064
      %v1148 = vmul.f32 %v1003, %v1068
      %v1149 = vmul.f32 %v1003, %v1072
      %v1150 = vmul.f32 %v1003, %v1076
      %v1151 = vmul.f32 %v1003, %v1080
      %v1152 = vmul.f32 %v1003, %v1084
      %v1153 = vmul.f32 %v1003, %v1088
      %v1154 = vmul.f32 %v1003, %v1092
      %v1155 = vmul.f32 %v1003, %v1096
      %v1156 = vmul.f32 %v1003, %v1100
      %v1157 = vmul.f32 %v1003, %v1104
      %v1158 = vmul.f32 %v1003, %v1108
      %v1159 = vmul.f32 %v1003, %v1112
      %v1160 = vmul.f32 %v1003, %v1116
      %v1161 = vmul.f32 %v1003, %v1120
      %v1162 = vmul.f32 %v1003, %v1124
      %v1163 = vmul.f32 %v1003, %v1128
      %v1164 = vmul.f32 %v1003, %v1132
      %v1165 = vadd.f32 %v969, %v1133
      %v1166 = vadd.f32 %v970, %v1134
      %v1167 = vadd.f32 %v971, %v1135
      %v1168 = vadd.f32 %v972, %v1136
      %v1169 = vadd.f32 %v973, %v1137
      %v1170 = vadd.f32 %v974, %v1138
      %v1171 = vadd.f32 %v975, %v1139
      %v1172 = vadd.f32 %v976, %v1140
      %v1173 = vadd.f32 %v977, %v1141
      %v1174 = vadd.f32 %v978, %v1142
      %v1175 = vadd.f32 %v979, %v1143
      %v1176 = vadd.f32 %v980, %v1144
      %v1177 = vadd.f32 %v981, %v1145
      %v1178 = vadd.f32 %v982, %v1146
      %v1179 = vadd.f32 %v983, %v1147
      %v1180 = vadd.f32 %v984, %v1148
      %v1181 = vadd.f32 %v985, %v1149
      %v1182 = vadd.f32 %v986, %v1150
      %v1183 = vadd.f32 %v987, %v1151
      %v1184 = vadd.f32 %v988, %v1152
      %v1185 = vadd.f32 %v989, %v1153
      %v1186 = vadd.f32 %v990, %v1154
      %v1187 = vadd.f32 %v991, %v1155
      %v1188 = vadd.f32 %v992, %v1156
      %v1189 = vadd.f32 %v993, %v1157
      %v1190 = vadd.f32 %v994, %v1158
      %v1191 = vadd.f32 %v995, %v1159
      %v1192 = vadd.f32 %v996, %v1160
      %v1193 = vadd.f32 %v997, %v1161
      %v1194 = vadd.f32 %v998, %v1162
      %v1195 = vadd.f32 %v999, %v1163
      %v1196 = vadd.f32 %v1000, %v1164
      %1197 = vset.pattern.permute.xlu0 2
      %1198 = vperm.xlu0 %1197, %v835
      %v1199 = vpop.permute.xlu0 %1198
      %v1201 = vlaneseq
      %v1202 = vshrl.u32 %v1201, 7
      %v1203 = vsub.s32 2, %v1202
      %v1204 = vrot.slane %v548, %v1203
      %v1205 = vlaneseq
      %v1206 = vshrl.u32 %v1205, 7
      %v1207 = vsub.s32 2, %v1206
      %v1208 = vrot.slane %v550, %v1207
      %v1209 = vlaneseq
      %v1210 = vshrl.u32 %v1209, 7
      %v1211 = vsub.s32 2, %v1210
      %v1212 = vrot.slane %v552, %v1211
      %v1213 = vlaneseq
      %v1214 = vshrl.u32 %v1213, 7
      %v1215 = vsub.s32 2, %v1214
      %v1216 = vrot.slane %v554, %v1215
      %v1217 = vlaneseq
      %v1218 = vshrl.u32 %v1217, 7
      %v1219 = vsub.s32 2, %v1218
      %v1220 = vrot.slane %v556, %v1219
      %v1221 = vlaneseq
      %v1222 = vshrl.u32 %v1221, 7
      %v1223 = vsub.s32 2, %v1222
      %v1224 = vrot.slane %v558, %v1223
      %v1225 = vlaneseq
      %v1226 = vshrl.u32 %v1225, 7
      %v1227 = vsub.s32 2, %v1226
      %v1228 = vrot.slane %v560, %v1227
      %v1229 = vlaneseq
      %v1230 = vshrl.u32 %v1229, 7
      %v1231 = vsub.s32 2, %v1230
      %v1232 = vrot.slane %v562, %v1231
      %v1233 = vlaneseq
      %v1234 = vshrl.u32 %v1233, 7
      %v1235 = vsub.s32 2, %v1234
      %v1236 = vrot.slane %v564, %v1235
      %v1237 = vlaneseq
      %v1238 = vshrl.u32 %v1237, 7
      %v1239 = vsub.s32 2, %v1238
      %v1240 = vrot.slane %v566, %v1239
      %v1241 = vlaneseq
      %v1242 = vshrl.u32 %v1241, 7
      %v1243 = vsub.s32 2, %v1242
      %v1244 = vrot.slane %v568, %v1243
      %v1245 = vlaneseq
      %v1246 = vshrl.u32 %v1245, 7
      %v1247 = vsub.s32 2, %v1246
      %v1248 = vrot.slane %v570, %v1247
      %v1249 = vlaneseq
      %v1250 = vshrl.u32 %v1249, 7
      %v1251 = vsub.s32 2, %v1250
      %v1252 = vrot.slane %v572, %v1251
      %v1253 = vlaneseq
      %v1254 = vshrl.u32 %v1253, 7
      %v1255 = vsub.s32 2, %v1254
      %v1256 = vrot.slane %v574, %v1255
      %v1257 = vlaneseq
      %v1258 = vshrl.u32 %v1257, 7
      %v1259 = vsub.s32 2, %v1258
      %v1260 = vrot.slane %v576, %v1259
      %v1261 = vlaneseq
      %v1262 = vshrl.u32 %v1261, 7
      %v1263 = vsub.s32 2, %v1262
      %v1264 = vrot.slane %v578, %v1263
      %v1265 = vlaneseq
      %v1266 = vshrl.u32 %v1265, 7
      %v1267 = vsub.s32 2, %v1266
      %v1268 = vrot.slane %v580, %v1267
      %v1269 = vlaneseq
      %v1270 = vshrl.u32 %v1269, 7
      %v1271 = vsub.s32 2, %v1270
      %v1272 = vrot.slane %v582, %v1271
      %v1273 = vlaneseq
      %v1274 = vshrl.u32 %v1273, 7
      %v1275 = vsub.s32 2, %v1274
      %v1276 = vrot.slane %v584, %v1275
      %v1277 = vlaneseq
      %v1278 = vshrl.u32 %v1277, 7
      %v1279 = vsub.s32 2, %v1278
      %v1280 = vrot.slane %v586, %v1279
      %v1281 = vlaneseq
      %v1282 = vshrl.u32 %v1281, 7
      %v1283 = vsub.s32 2, %v1282
      %v1284 = vrot.slane %v588, %v1283
      %v1285 = vlaneseq
      %v1286 = vshrl.u32 %v1285, 7
      %v1287 = vsub.s32 2, %v1286
      %v1288 = vrot.slane %v590, %v1287
      %v1289 = vlaneseq
      %v1290 = vshrl.u32 %v1289, 7
      %v1291 = vsub.s32 2, %v1290
      %v1292 = vrot.slane %v592, %v1291
      %v1293 = vlaneseq
      %v1294 = vshrl.u32 %v1293, 7
      %v1295 = vsub.s32 2, %v1294
      %v1296 = vrot.slane %v594, %v1295
      %v1297 = vlaneseq
      %v1298 = vshrl.u32 %v1297, 7
      %v1299 = vsub.s32 2, %v1298
      %v1300 = vrot.slane %v596, %v1299
      %v1301 = vlaneseq
      %v1302 = vshrl.u32 %v1301, 7
      %v1303 = vsub.s32 2, %v1302
      %v1304 = vrot.slane %v598, %v1303
      %v1305 = vlaneseq
      %v1306 = vshrl.u32 %v1305, 7
      %v1307 = vsub.s32 2, %v1306
      %v1308 = vrot.slane %v600, %v1307
      %v1309 = vlaneseq
      %v1310 = vshrl.u32 %v1309, 7
      %v1311 = vsub.s32 2, %v1310
      %v1312 = vrot.slane %v602, %v1311
      %v1313 = vlaneseq
      %v1314 = vshrl.u32 %v1313, 7
      %v1315 = vsub.s32 2, %v1314
      %v1316 = vrot.slane %v604, %v1315
      %v1317 = vlaneseq
      %v1318 = vshrl.u32 %v1317, 7
      %v1319 = vsub.s32 2, %v1318
      %v1320 = vrot.slane %v606, %v1319
      %v1321 = vlaneseq
      %v1322 = vshrl.u32 %v1321, 7
      %v1323 = vsub.s32 2, %v1322
      %v1324 = vrot.slane %v608, %v1323
      %v1325 = vlaneseq
      %v1326 = vshrl.u32 %v1325, 7
      %v1327 = vsub.s32 2, %v1326
      %v1328 = vrot.slane %v610, %v1327
      %v1329 = vmul.f32 %v1199, %v1204
      %v1330 = vmul.f32 %v1199, %v1208
      %v1331 = vmul.f32 %v1199, %v1212
      %v1332 = vmul.f32 %v1199, %v1216
      %v1333 = vmul.f32 %v1199, %v1220
      %v1334 = vmul.f32 %v1199, %v1224
      %v1335 = vmul.f32 %v1199, %v1228
      %v1336 = vmul.f32 %v1199, %v1232
      %v1337 = vmul.f32 %v1199, %v1236
      %v1338 = vmul.f32 %v1199, %v1240
      %v1339 = vmul.f32 %v1199, %v1244
      %v1340 = vmul.f32 %v1199, %v1248
      %v1341 = vmul.f32 %v1199, %v1252
      %v1342 = vmul.f32 %v1199, %v1256
      %v1343 = vmul.f32 %v1199, %v1260
      %v1344 = vmul.f32 %v1199, %v1264
      %v1345 = vmul.f32 %v1199, %v1268
      %v1346 = vmul.f32 %v1199, %v1272
      %v1347 = vmul.f32 %v1199, %v1276
      %v1348 = vmul.f32 %v1199, %v1280
      %v1349 = vmul.f32 %v1199, %v1284
      %v1350 = vmul.f32 %v1199, %v1288
      %v1351 = vmul.f32 %v1199, %v1292
      %v1352 = vmul.f32 %v1199, %v1296
      %v1353 = vmul.f32 %v1199, %v1300
      %v1354 = vmul.f32 %v1199, %v1304
      %v1355 = vmul.f32 %v1199, %v1308
      %v1356 = vmul.f32 %v1199, %v1312
      %v1357 = vmul.f32 %v1199, %v1316
      %v1358 = vmul.f32 %v1199, %v1320
      %v1359 = vmul.f32 %v1199, %v1324
      %v1360 = vmul.f32 %v1199, %v1328
      %v1361 = vadd.f32 %v1165, %v1329
      %v1362 = vadd.f32 %v1166, %v1330
      %v1363 = vadd.f32 %v1167, %v1331
      %v1364 = vadd.f32 %v1168, %v1332
      %v1365 = vadd.f32 %v1169, %v1333
      %v1366 = vadd.f32 %v1170, %v1334
      %v1367 = vadd.f32 %v1171, %v1335
      %v1368 = vadd.f32 %v1172, %v1336
      %v1369 = vadd.f32 %v1173, %v1337
      %v1370 = vadd.f32 %v1174, %v1338
      %v1371 = vadd.f32 %v1175, %v1339
      %v1372 = vadd.f32 %v1176, %v1340
      %v1373 = vadd.f32 %v1177, %v1341
      %v1374 = vadd.f32 %v1178, %v1342
      %v1375 = vadd.f32 %v1179, %v1343
      %v1376 = vadd.f32 %v1180, %v1344
      %v1377 = vadd.f32 %v1181, %v1345
      %v1378 = vadd.f32 %v1182, %v1346
      %v1379 = vadd.f32 %v1183, %v1347
      %v1380 = vadd.f32 %v1184, %v1348
      %v1381 = vadd.f32 %v1185, %v1349
      %v1382 = vadd.f32 %v1186, %v1350
      %v1383 = vadd.f32 %v1187, %v1351
      %v1384 = vadd.f32 %v1188, %v1352
      %v1385 = vadd.f32 %v1189, %v1353
      %v1386 = vadd.f32 %v1190, %v1354
      %v1387 = vadd.f32 %v1191, %v1355
      %v1388 = vadd.f32 %v1192, %v1356
      %v1389 = vadd.f32 %v1193, %v1357
      %v1390 = vadd.f32 %v1194, %v1358
      %v1391 = vadd.f32 %v1195, %v1359
      %v1392 = vadd.f32 %v1196, %v1360
      %1393 = vset.pattern.permute.xlu0 3
      %1394 = vperm.xlu0 %1393, %v835
      %v1395 = vpop.permute.xlu0 %1394
      %v1397 = vlaneseq
      %v1398 = vshrl.u32 %v1397, 7
      %v1399 = vsub.s32 3, %v1398
      %v1400 = vrot.slane %v548, %v1399
      %v1401 = vlaneseq
      %v1402 = vshrl.u32 %v1401, 7
      %v1403 = vsub.s32 3, %v1402
      %v1404 = vrot.slane %v550, %v1403
      %v1405 = vlaneseq
      %v1406 = vshrl.u32 %v1405, 7
      %v1407 = vsub.s32 3, %v1406
      %v1408 = vrot.slane %v552, %v1407
      %v1409 = vlaneseq
      %v1410 = vshrl.u32 %v1409, 7
      %v1411 = vsub.s32 3, %v1410
      %v1412 = vrot.slane %v554, %v1411
      %v1413 = vlaneseq
      %v1414 = vshrl.u32 %v1413, 7
      %v1415 = vsub.s32 3, %v1414
      %v1416 = vrot.slane %v556, %v1415
      %v1417 = vlaneseq
      %v1418 = vshrl.u32 %v1417, 7
      %v1419 = vsub.s32 3, %v1418
      %v1420 = vrot.slane %v558, %v1419
      %v1421 = vlaneseq
      %v1422 = vshrl.u32 %v1421, 7
      %v1423 = vsub.s32 3, %v1422
      %v1424 = vrot.slane %v560, %v1423
      %v1425 = vlaneseq
      %v1426 = vshrl.u32 %v1425, 7
      %v1427 = vsub.s32 3, %v1426
      %v1428 = vrot.slane %v562, %v1427
      %v1429 = vlaneseq
      %v1430 = vshrl.u32 %v1429, 7
      %v1431 = vsub.s32 3, %v1430
      %v1432 = vrot.slane %v564, %v1431
      %v1433 = vlaneseq
      %v1434 = vshrl.u32 %v1433, 7
      %v1435 = vsub.s32 3, %v1434
      %v1436 = vrot.slane %v566, %v1435
      %v1437 = vlaneseq
      %v1438 = vshrl.u32 %v1437, 7
      %v1439 = vsub.s32 3, %v1438
      %v1440 = vrot.slane %v568, %v1439
      %v1441 = vlaneseq
      %v1442 = vshrl.u32 %v1441, 7
      %v1443 = vsub.s32 3, %v1442
      %v1444 = vrot.slane %v570, %v1443
      %v1445 = vlaneseq
      %v1446 = vshrl.u32 %v1445, 7
      %v1447 = vsub.s32 3, %v1446
      %v1448 = vrot.slane %v572, %v1447
      %v1449 = vlaneseq
      %v1450 = vshrl.u32 %v1449, 7
      %v1451 = vsub.s32 3, %v1450
      %v1452 = vrot.slane %v574, %v1451
      %v1453 = vlaneseq
      %v1454 = vshrl.u32 %v1453, 7
      %v1455 = vsub.s32 3, %v1454
      %v1456 = vrot.slane %v576, %v1455
      %v1457 = vlaneseq
      %v1458 = vshrl.u32 %v1457, 7
      %v1459 = vsub.s32 3, %v1458
      %v1460 = vrot.slane %v578, %v1459
      %v1461 = vlaneseq
      %v1462 = vshrl.u32 %v1461, 7
      %v1463 = vsub.s32 3, %v1462
      %v1464 = vrot.slane %v580, %v1463
      %v1465 = vlaneseq
      %v1466 = vshrl.u32 %v1465, 7
      %v1467 = vsub.s32 3, %v1466
      %v1468 = vrot.slane %v582, %v1467
      %v1469 = vlaneseq
      %v1470 = vshrl.u32 %v1469, 7
      %v1471 = vsub.s32 3, %v1470
      %v1472 = vrot.slane %v584, %v1471
      %v1473 = vlaneseq
      %v1474 = vshrl.u32 %v1473, 7
      %v1475 = vsub.s32 3, %v1474
      %v1476 = vrot.slane %v586, %v1475
      %v1477 = vlaneseq
      %v1478 = vshrl.u32 %v1477, 7
      %v1479 = vsub.s32 3, %v1478
      %v1480 = vrot.slane %v588, %v1479
      %v1481 = vlaneseq
      %v1482 = vshrl.u32 %v1481, 7
      %v1483 = vsub.s32 3, %v1482
      %v1484 = vrot.slane %v590, %v1483
      %v1485 = vlaneseq
      %v1486 = vshrl.u32 %v1485, 7
      %v1487 = vsub.s32 3, %v1486
      %v1488 = vrot.slane %v592, %v1487
      %v1489 = vlaneseq
      %v1490 = vshrl.u32 %v1489, 7
      %v1491 = vsub.s32 3, %v1490
      %v1492 = vrot.slane %v594, %v1491
      %v1493 = vlaneseq
      %v1494 = vshrl.u32 %v1493, 7
      %v1495 = vsub.s32 3, %v1494
      %v1496 = vrot.slane %v596, %v1495
      %v1497 = vlaneseq
      %v1498 = vshrl.u32 %v1497, 7
      %v1499 = vsub.s32 3, %v1498
      %v1500 = vrot.slane %v598, %v1499
      %v1501 = vlaneseq
      %v1502 = vshrl.u32 %v1501, 7
      %v1503 = vsub.s32 3, %v1502
      %v1504 = vrot.slane %v600, %v1503
      %v1505 = vlaneseq
      %v1506 = vshrl.u32 %v1505, 7
      %v1507 = vsub.s32 3, %v1506
      %v1508 = vrot.slane %v602, %v1507
      %v1509 = vlaneseq
      %v1510 = vshrl.u32 %v1509, 7
      %v1511 = vsub.s32 3, %v1510
      %v1512 = vrot.slane %v604, %v1511
      %v1513 = vlaneseq
      %v1514 = vshrl.u32 %v1513, 7
      %v1515 = vsub.s32 3, %v1514
      %v1516 = vrot.slane %v606, %v1515
      %v1517 = vlaneseq
      %v1518 = vshrl.u32 %v1517, 7
      %v1519 = vsub.s32 3, %v1518
      %v1520 = vrot.slane %v608, %v1519
      %v1521 = vlaneseq
      %v1522 = vshrl.u32 %v1521, 7
      %v1523 = vsub.s32 3, %v1522
      %v1524 = vrot.slane %v610, %v1523
      %v1525 = vmul.f32 %v1395, %v1400
      %v1526 = vmul.f32 %v1395, %v1404
      %v1527 = vmul.f32 %v1395, %v1408
      %v1528 = vmul.f32 %v1395, %v1412
      %v1529 = vmul.f32 %v1395, %v1416
      %v1530 = vmul.f32 %v1395, %v1420
      %v1531 = vmul.f32 %v1395, %v1424
      %v1532 = vmul.f32 %v1395, %v1428
      %v1533 = vmul.f32 %v1395, %v1432
      %v1534 = vmul.f32 %v1395, %v1436
      %v1535 = vmul.f32 %v1395, %v1440
      %v1536 = vmul.f32 %v1395, %v1444
      %v1537 = vmul.f32 %v1395, %v1448
      %v1538 = vmul.f32 %v1395, %v1452
      %v1539 = vmul.f32 %v1395, %v1456
      %v1540 = vmul.f32 %v1395, %v1460
      %v1541 = vmul.f32 %v1395, %v1464
      %v1542 = vmul.f32 %v1395, %v1468
      %v1543 = vmul.f32 %v1395, %v1472
      %v1544 = vmul.f32 %v1395, %v1476
      %v1545 = vmul.f32 %v1395, %v1480
      %v1546 = vmul.f32 %v1395, %v1484
      %v1547 = vmul.f32 %v1395, %v1488
      %v1548 = vmul.f32 %v1395, %v1492
      %v1549 = vmul.f32 %v1395, %v1496
      %v1550 = vmul.f32 %v1395, %v1500
      %v1551 = vmul.f32 %v1395, %v1504
      %v1552 = vmul.f32 %v1395, %v1508
      %v1553 = vmul.f32 %v1395, %v1512
      %v1554 = vmul.f32 %v1395, %v1516
      %v1555 = vmul.f32 %v1395, %v1520
      %v1556 = vmul.f32 %v1395, %v1524
      %v1557 = vadd.f32 %v1361, %v1525
      %v1558 = vadd.f32 %v1362, %v1526
      %v1559 = vadd.f32 %v1363, %v1527
      %v1560 = vadd.f32 %v1364, %v1528
      %v1561 = vadd.f32 %v1365, %v1529
      %v1562 = vadd.f32 %v1366, %v1530
      %v1563 = vadd.f32 %v1367, %v1531
      %v1564 = vadd.f32 %v1368, %v1532
      %v1565 = vadd.f32 %v1369, %v1533
      %v1566 = vadd.f32 %v1370, %v1534
      %v1567 = vadd.f32 %v1371, %v1535
      %v1568 = vadd.f32 %v1372, %v1536
      %v1569 = vadd.f32 %v1373, %v1537
      %v1570 = vadd.f32 %v1374, %v1538
      %v1571 = vadd.f32 %v1375, %v1539
      %v1572 = vadd.f32 %v1376, %v1540
      %v1573 = vadd.f32 %v1377, %v1541
      %v1574 = vadd.f32 %v1378, %v1542
      %v1575 = vadd.f32 %v1379, %v1543
      %v1576 = vadd.f32 %v1380, %v1544
      %v1577 = vadd.f32 %v1381, %v1545
      %v1578 = vadd.f32 %v1382, %v1546
      %v1579 = vadd.f32 %v1383, %v1547
      %v1580 = vadd.f32 %v1384, %v1548
      %v1581 = vadd.f32 %v1385, %v1549
      %v1582 = vadd.f32 %v1386, %v1550
      %v1583 = vadd.f32 %v1387, %v1551
      %v1584 = vadd.f32 %v1388, %v1552
      %v1585 = vadd.f32 %v1389, %v1553
      %v1586 = vadd.f32 %v1390, %v1554
      %v1587 = vadd.f32 %v1391, %v1555
      %v1588 = vadd.f32 %v1392, %v1556
      %1589 = vset.pattern.permute.xlu0 4
      %1590 = vperm.xlu0 %1589, %v835
      %v1591 = vpop.permute.xlu0 %1590
      %v1593 = vlaneseq
      %v1594 = vshrl.u32 %v1593, 7
      %v1595 = vsub.s32 4, %v1594
      %v1596 = vrot.slane %v548, %v1595
      %v1597 = vlaneseq
      %v1598 = vshrl.u32 %v1597, 7
      %v1599 = vsub.s32 4, %v1598
      %v1600 = vrot.slane %v550, %v1599
      %v1601 = vlaneseq
      %v1602 = vshrl.u32 %v1601, 7
      %v1603 = vsub.s32 4, %v1602
      %v1604 = vrot.slane %v552, %v1603
      %v1605 = vlaneseq
      %v1606 = vshrl.u32 %v1605, 7
      %v1607 = vsub.s32 4, %v1606
      %v1608 = vrot.slane %v554, %v1607
      %v1609 = vlaneseq
      %v1610 = vshrl.u32 %v1609, 7
      %v1611 = vsub.s32 4, %v1610
      %v1612 = vrot.slane %v556, %v1611
      %v1613 = vlaneseq
      %v1614 = vshrl.u32 %v1613, 7
      %v1615 = vsub.s32 4, %v1614
      %v1616 = vrot.slane %v558, %v1615
      %v1617 = vlaneseq
      %v1618 = vshrl.u32 %v1617, 7
      %v1619 = vsub.s32 4, %v1618
      %v1620 = vrot.slane %v560, %v1619
      %v1621 = vlaneseq
      %v1622 = vshrl.u32 %v1621, 7
      %v1623 = vsub.s32 4, %v1622
      %v1624 = vrot.slane %v562, %v1623
      %v1625 = vlaneseq
      %v1626 = vshrl.u32 %v1625, 7
      %v1627 = vsub.s32 4, %v1626
      %v1628 = vrot.slane %v564, %v1627
      %v1629 = vlaneseq
      %v1630 = vshrl.u32 %v1629, 7
      %v1631 = vsub.s32 4, %v1630
      %v1632 = vrot.slane %v566, %v1631
      %v1633 = vlaneseq
      %v1634 = vshrl.u32 %v1633, 7
      %v1635 = vsub.s32 4, %v1634
      %v1636 = vrot.slane %v568, %v1635
      %v1637 = vlaneseq
      %v1638 = vshrl.u32 %v1637, 7
      %v1639 = vsub.s32 4, %v1638
      %v1640 = vrot.slane %v570, %v1639
      %v1641 = vlaneseq
      %v1642 = vshrl.u32 %v1641, 7
      %v1643 = vsub.s32 4, %v1642
      %v1644 = vrot.slane %v572, %v1643
      %v1645 = vlaneseq
      %v1646 = vshrl.u32 %v1645, 7
      %v1647 = vsub.s32 4, %v1646
      %v1648 = vrot.slane %v574, %v1647
      %v1649 = vlaneseq
      %v1650 = vshrl.u32 %v1649, 7
      %v1651 = vsub.s32 4, %v1650
      %v1652 = vrot.slane %v576, %v1651
      %v1653 = vlaneseq
      %v1654 = vshrl.u32 %v1653, 7
      %v1655 = vsub.s32 4, %v1654
      %v1656 = vrot.slane %v578, %v1655
      %v1657 = vlaneseq
      %v1658 = vshrl.u32 %v1657, 7
      %v1659 = vsub.s32 4, %v1658
      %v1660 = vrot.slane %v580, %v1659
      %v1661 = vlaneseq
      %v1662 = vshrl.u32 %v1661, 7
      %v1663 = vsub.s32 4, %v1662
      %v1664 = vrot.slane %v582, %v1663
      %v1665 = vlaneseq
      %v1666 = vshrl.u32 %v1665, 7
      %v1667 = vsub.s32 4, %v1666
      %v1668 = vrot.slane %v584, %v1667
      %v1669 = vlaneseq
      %v1670 = vshrl.u32 %v1669, 7
      %v1671 = vsub.s32 4, %v1670
      %v1672 = vrot.slane %v586, %v1671
      %v1673 = vlaneseq
      %v1674 = vshrl.u32 %v1673, 7
      %v1675 = vsub.s32 4, %v1674
      %v1676 = vrot.slane %v588, %v1675
      %v1677 = vlaneseq
      %v1678 = vshrl.u32 %v1677, 7
      %v1679 = vsub.s32 4, %v1678
      %v1680 = vrot.slane %v590, %v1679
      %v1681 = vlaneseq
      %v1682 = vshrl.u32 %v1681, 7
      %v1683 = vsub.s32 4, %v1682
      %v1684 = vrot.slane %v592, %v1683
      %v1685 = vlaneseq
      %v1686 = vshrl.u32 %v1685, 7
      %v1687 = vsub.s32 4, %v1686
      %v1688 = vrot.slane %v594, %v1687
      %v1689 = vlaneseq
      %v1690 = vshrl.u32 %v1689, 7
      %v1691 = vsub.s32 4, %v1690
      %v1692 = vrot.slane %v596, %v1691
      %v1693 = vlaneseq
      %v1694 = vshrl.u32 %v1693, 7
      %v1695 = vsub.s32 4, %v1694
      %v1696 = vrot.slane %v598, %v1695
      %v1697 = vlaneseq
      %v1698 = vshrl.u32 %v1697, 7
      %v1699 = vsub.s32 4, %v1698
      %v1700 = vrot.slane %v600, %v1699
      %v1701 = vlaneseq
      %v1702 = vshrl.u32 %v1701, 7
      %v1703 = vsub.s32 4, %v1702
      %v1704 = vrot.slane %v602, %v1703
      %v1705 = vlaneseq
      %v1706 = vshrl.u32 %v1705, 7
      %v1707 = vsub.s32 4, %v1706
      %v1708 = vrot.slane %v604, %v1707
      %v1709 = vlaneseq
      %v1710 = vshrl.u32 %v1709, 7
      %v1711 = vsub.s32 4, %v1710
      %v1712 = vrot.slane %v606, %v1711
      %v1713 = vlaneseq
      %v1714 = vshrl.u32 %v1713, 7
      %v1715 = vsub.s32 4, %v1714
      %v1716 = vrot.slane %v608, %v1715
      %v1717 = vlaneseq
      %v1718 = vshrl.u32 %v1717, 7
      %v1719 = vsub.s32 4, %v1718
      %v1720 = vrot.slane %v610, %v1719
      %v1721 = vmul.f32 %v1591, %v1596
      %v1722 = vmul.f32 %v1591, %v1600
      %v1723 = vmul.f32 %v1591, %v1604
      %v1724 = vmul.f32 %v1591, %v1608
      %v1725 = vmul.f32 %v1591, %v1612
      %v1726 = vmul.f32 %v1591, %v1616
      %v1727 = vmul.f32 %v1591, %v1620
      %v1728 = vmul.f32 %v1591, %v1624
      %v1729 = vmul.f32 %v1591, %v1628
      %v1730 = vmul.f32 %v1591, %v1632
      %v1731 = vmul.f32 %v1591, %v1636
      %v1732 = vmul.f32 %v1591, %v1640
      %v1733 = vmul.f32 %v1591, %v1644
      %v1734 = vmul.f32 %v1591, %v1648
      %v1735 = vmul.f32 %v1591, %v1652
      %v1736 = vmul.f32 %v1591, %v1656
      %v1737 = vmul.f32 %v1591, %v1660
      %v1738 = vmul.f32 %v1591, %v1664
      %v1739 = vmul.f32 %v1591, %v1668
      %v1740 = vmul.f32 %v1591, %v1672
      %v1741 = vmul.f32 %v1591, %v1676
      %v1742 = vmul.f32 %v1591, %v1680
      %v1743 = vmul.f32 %v1591, %v1684
      %v1744 = vmul.f32 %v1591, %v1688
      %v1745 = vmul.f32 %v1591, %v1692
      %v1746 = vmul.f32 %v1591, %v1696
      %v1747 = vmul.f32 %v1591, %v1700
      %v1748 = vmul.f32 %v1591, %v1704
      %v1749 = vmul.f32 %v1591, %v1708
      %v1750 = vmul.f32 %v1591, %v1712
      %v1751 = vmul.f32 %v1591, %v1716
      %v1752 = vmul.f32 %v1591, %v1720
      %v1753 = vadd.f32 %v1557, %v1721
      %v1754 = vadd.f32 %v1558, %v1722
      %v1755 = vadd.f32 %v1559, %v1723
      %v1756 = vadd.f32 %v1560, %v1724
      %v1757 = vadd.f32 %v1561, %v1725
      %v1758 = vadd.f32 %v1562, %v1726
      %v1759 = vadd.f32 %v1563, %v1727
      %v1760 = vadd.f32 %v1564, %v1728
      %v1761 = vadd.f32 %v1565, %v1729
      %v1762 = vadd.f32 %v1566, %v1730
      %v1763 = vadd.f32 %v1567, %v1731
      %v1764 = vadd.f32 %v1568, %v1732
      %v1765 = vadd.f32 %v1569, %v1733
      %v1766 = vadd.f32 %v1570, %v1734
      %v1767 = vadd.f32 %v1571, %v1735
      %v1768 = vadd.f32 %v1572, %v1736
      %v1769 = vadd.f32 %v1573, %v1737
      %v1770 = vadd.f32 %v1574, %v1738
      %v1771 = vadd.f32 %v1575, %v1739
      %v1772 = vadd.f32 %v1576, %v1740
      %v1773 = vadd.f32 %v1577, %v1741
      %v1774 = vadd.f32 %v1578, %v1742
      %v1775 = vadd.f32 %v1579, %v1743
      %v1776 = vadd.f32 %v1580, %v1744
      %v1777 = vadd.f32 %v1581, %v1745
      %v1778 = vadd.f32 %v1582, %v1746
      %v1779 = vadd.f32 %v1583, %v1747
      %v1780 = vadd.f32 %v1584, %v1748
      %v1781 = vadd.f32 %v1585, %v1749
      %v1782 = vadd.f32 %v1586, %v1750
      %v1783 = vadd.f32 %v1587, %v1751
      %v1784 = vadd.f32 %v1588, %v1752
      %1785 = vset.pattern.permute.xlu0 5
      %1786 = vperm.xlu0 %1785, %v835
      %v1787 = vpop.permute.xlu0 %1786
      %v1789 = vlaneseq
      %v1790 = vshrl.u32 %v1789, 7
      %v1791 = vsub.s32 5, %v1790
      %v1792 = vrot.slane %v548, %v1791
      %v1793 = vlaneseq
      %v1794 = vshrl.u32 %v1793, 7
      %v1795 = vsub.s32 5, %v1794
      %v1796 = vrot.slane %v550, %v1795
      %v1797 = vlaneseq
      %v1798 = vshrl.u32 %v1797, 7
      %v1799 = vsub.s32 5, %v1798
      %v1800 = vrot.slane %v552, %v1799
      %v1801 = vlaneseq
      %v1802 = vshrl.u32 %v1801, 7
      %v1803 = vsub.s32 5, %v1802
      %v1804 = vrot.slane %v554, %v1803
      %v1805 = vlaneseq
      %v1806 = vshrl.u32 %v1805, 7
      %v1807 = vsub.s32 5, %v1806
      %v1808 = vrot.slane %v556, %v1807
      %v1809 = vlaneseq
      %v1810 = vshrl.u32 %v1809, 7
      %v1811 = vsub.s32 5, %v1810
      %v1812 = vrot.slane %v558, %v1811
      %v1813 = vlaneseq
      %v1814 = vshrl.u32 %v1813, 7
      %v1815 = vsub.s32 5, %v1814
      %v1816 = vrot.slane %v560, %v1815
      %v1817 = vlaneseq
      %v1818 = vshrl.u32 %v1817, 7
      %v1819 = vsub.s32 5, %v1818
      %v1820 = vrot.slane %v562, %v1819
      %v1821 = vlaneseq
      %v1822 = vshrl.u32 %v1821, 7
      %v1823 = vsub.s32 5, %v1822
      %v1824 = vrot.slane %v564, %v1823
      %v1825 = vlaneseq
      %v1826 = vshrl.u32 %v1825, 7
      %v1827 = vsub.s32 5, %v1826
      %v1828 = vrot.slane %v566, %v1827
      %v1829 = vlaneseq
      %v1830 = vshrl.u32 %v1829, 7
      %v1831 = vsub.s32 5, %v1830
      %v1832 = vrot.slane %v568, %v1831
      %v1833 = vlaneseq
      %v1834 = vshrl.u32 %v1833, 7
      %v1835 = vsub.s32 5, %v1834
      %v1836 = vrot.slane %v570, %v1835
      %v1837 = vlaneseq
      %v1838 = vshrl.u32 %v1837, 7
      %v1839 = vsub.s32 5, %v1838
      %v1840 = vrot.slane %v572, %v1839
      %v1841 = vlaneseq
      %v1842 = vshrl.u32 %v1841, 7
      %v1843 = vsub.s32 5, %v1842
      %v1844 = vrot.slane %v574, %v1843
      %v1845 = vlaneseq
      %v1846 = vshrl.u32 %v1845, 7
      %v1847 = vsub.s32 5, %v1846
      %v1848 = vrot.slane %v576, %v1847
      %v1849 = vlaneseq
      %v1850 = vshrl.u32 %v1849, 7
      %v1851 = vsub.s32 5, %v1850
      %v1852 = vrot.slane %v578, %v1851
      %v1853 = vlaneseq
      %v1854 = vshrl.u32 %v1853, 7
      %v1855 = vsub.s32 5, %v1854
      %v1856 = vrot.slane %v580, %v1855
      %v1857 = vlaneseq
      %v1858 = vshrl.u32 %v1857, 7
      %v1859 = vsub.s32 5, %v1858
      %v1860 = vrot.slane %v582, %v1859
      %v1861 = vlaneseq
      %v1862 = vshrl.u32 %v1861, 7
      %v1863 = vsub.s32 5, %v1862
      %v1864 = vrot.slane %v584, %v1863
      %v1865 = vlaneseq
      %v1866 = vshrl.u32 %v1865, 7
      %v1867 = vsub.s32 5, %v1866
      %v1868 = vrot.slane %v586, %v1867
      %v1869 = vlaneseq
      %v1870 = vshrl.u32 %v1869, 7
      %v1871 = vsub.s32 5, %v1870
      %v1872 = vrot.slane %v588, %v1871
      %v1873 = vlaneseq
      %v1874 = vshrl.u32 %v1873, 7
      %v1875 = vsub.s32 5, %v1874
      %v1876 = vrot.slane %v590, %v1875
      %v1877 = vlaneseq
      %v1878 = vshrl.u32 %v1877, 7
      %v1879 = vsub.s32 5, %v1878
      %v1880 = vrot.slane %v592, %v1879
      %v1881 = vlaneseq
      %v1882 = vshrl.u32 %v1881, 7
      %v1883 = vsub.s32 5, %v1882
      %v1884 = vrot.slane %v594, %v1883
      %v1885 = vlaneseq
      %v1886 = vshrl.u32 %v1885, 7
      %v1887 = vsub.s32 5, %v1886
      %v1888 = vrot.slane %v596, %v1887
      %v1889 = vlaneseq
      %v1890 = vshrl.u32 %v1889, 7
      %v1891 = vsub.s32 5, %v1890
      %v1892 = vrot.slane %v598, %v1891
      %v1893 = vlaneseq
      %v1894 = vshrl.u32 %v1893, 7
      %v1895 = vsub.s32 5, %v1894
      %v1896 = vrot.slane %v600, %v1895
      %v1897 = vlaneseq
      %v1898 = vshrl.u32 %v1897, 7
      %v1899 = vsub.s32 5, %v1898
      %v1900 = vrot.slane %v602, %v1899
      %v1901 = vlaneseq
      %v1902 = vshrl.u32 %v1901, 7
      %v1903 = vsub.s32 5, %v1902
      %v1904 = vrot.slane %v604, %v1903
      %v1905 = vlaneseq
      %v1906 = vshrl.u32 %v1905, 7
      %v1907 = vsub.s32 5, %v1906
      %v1908 = vrot.slane %v606, %v1907
      %v1909 = vlaneseq
      %v1910 = vshrl.u32 %v1909, 7
      %v1911 = vsub.s32 5, %v1910
      %v1912 = vrot.slane %v608, %v1911
      %v1913 = vlaneseq
      %v1914 = vshrl.u32 %v1913, 7
      %v1915 = vsub.s32 5, %v1914
      %v1916 = vrot.slane %v610, %v1915
      %v1917 = vmul.f32 %v1787, %v1792
      %v1918 = vmul.f32 %v1787, %v1796
      %v1919 = vmul.f32 %v1787, %v1800
      %v1920 = vmul.f32 %v1787, %v1804
      %v1921 = vmul.f32 %v1787, %v1808
      %v1922 = vmul.f32 %v1787, %v1812
      %v1923 = vmul.f32 %v1787, %v1816
      %v1924 = vmul.f32 %v1787, %v1820
      %v1925 = vmul.f32 %v1787, %v1824
      %v1926 = vmul.f32 %v1787, %v1828
      %v1927 = vmul.f32 %v1787, %v1832
      %v1928 = vmul.f32 %v1787, %v1836
      %v1929 = vmul.f32 %v1787, %v1840
      %v1930 = vmul.f32 %v1787, %v1844
      %v1931 = vmul.f32 %v1787, %v1848
      %v1932 = vmul.f32 %v1787, %v1852
      %v1933 = vmul.f32 %v1787, %v1856
      %v1934 = vmul.f32 %v1787, %v1860
      %v1935 = vmul.f32 %v1787, %v1864
      %v1936 = vmul.f32 %v1787, %v1868
      %v1937 = vmul.f32 %v1787, %v1872
      %v1938 = vmul.f32 %v1787, %v1876
      %v1939 = vmul.f32 %v1787, %v1880
      %v1940 = vmul.f32 %v1787, %v1884
      %v1941 = vmul.f32 %v1787, %v1888
      %v1942 = vmul.f32 %v1787, %v1892
      %v1943 = vmul.f32 %v1787, %v1896
      %v1944 = vmul.f32 %v1787, %v1900
      %v1945 = vmul.f32 %v1787, %v1904
      %v1946 = vmul.f32 %v1787, %v1908
      %v1947 = vmul.f32 %v1787, %v1912
      %v1948 = vmul.f32 %v1787, %v1916
      %v1949 = vadd.f32 %v1753, %v1917
      %v1950 = vadd.f32 %v1754, %v1918
      %v1951 = vadd.f32 %v1755, %v1919
      %v1952 = vadd.f32 %v1756, %v1920
      %v1953 = vadd.f32 %v1757, %v1921
      %v1954 = vadd.f32 %v1758, %v1922
      %v1955 = vadd.f32 %v1759, %v1923
      %v1956 = vadd.f32 %v1760, %v1924
      %v1957 = vadd.f32 %v1761, %v1925
      %v1958 = vadd.f32 %v1762, %v1926
      %v1959 = vadd.f32 %v1763, %v1927
      %v1960 = vadd.f32 %v1764, %v1928
      %v1961 = vadd.f32 %v1765, %v1929
      %v1962 = vadd.f32 %v1766, %v1930
      %v1963 = vadd.f32 %v1767, %v1931
      %v1964 = vadd.f32 %v1768, %v1932
      %v1965 = vadd.f32 %v1769, %v1933
      %v1966 = vadd.f32 %v1770, %v1934
      %v1967 = vadd.f32 %v1771, %v1935
      %v1968 = vadd.f32 %v1772, %v1936
      %v1969 = vadd.f32 %v1773, %v1937
      %v1970 = vadd.f32 %v1774, %v1938
      %v1971 = vadd.f32 %v1775, %v1939
      %v1972 = vadd.f32 %v1776, %v1940
      %v1973 = vadd.f32 %v1777, %v1941
      %v1974 = vadd.f32 %v1778, %v1942
      %v1975 = vadd.f32 %v1779, %v1943
      %v1976 = vadd.f32 %v1780, %v1944
      %v1977 = vadd.f32 %v1781, %v1945
      %v1978 = vadd.f32 %v1782, %v1946
      %v1979 = vadd.f32 %v1783, %v1947
      %v1980 = vadd.f32 %v1784, %v1948
      %1981 = vset.pattern.permute.xlu0 6
      %1982 = vperm.xlu0 %1981, %v835
      %v1983 = vpop.permute.xlu0 %1982
      %v1985 = vlaneseq
      %v1986 = vshrl.u32 %v1985, 7
      %v1987 = vsub.s32 6, %v1986
      %v1988 = vrot.slane %v548, %v1987
      %v1989 = vlaneseq
      %v1990 = vshrl.u32 %v1989, 7
      %v1991 = vsub.s32 6, %v1990
      %v1992 = vrot.slane %v550, %v1991
      %v1993 = vlaneseq
      %v1994 = vshrl.u32 %v1993, 7
      %v1995 = vsub.s32 6, %v1994
      %v1996 = vrot.slane %v552, %v1995
      %v1997 = vlaneseq
      %v1998 = vshrl.u32 %v1997, 7
      %v1999 = vsub.s32 6, %v1998
      %v2000 = vrot.slane %v554, %v1999
      %v2001 = vlaneseq
      %v2002 = vshrl.u32 %v2001, 7
      %v2003 = vsub.s32 6, %v2002
      %v2004 = vrot.slane %v556, %v2003
      %v2005 = vlaneseq
      %v2006 = vshrl.u32 %v2005, 7
      %v2007 = vsub.s32 6, %v2006
      %v2008 = vrot.slane %v558, %v2007
      %v2009 = vlaneseq
      %v2010 = vshrl.u32 %v2009, 7
      %v2011 = vsub.s32 6, %v2010
      %v2012 = vrot.slane %v560, %v2011
      %v2013 = vlaneseq
      %v2014 = vshrl.u32 %v2013, 7
      %v2015 = vsub.s32 6, %v2014
      %v2016 = vrot.slane %v562, %v2015
      %v2017 = vlaneseq
      %v2018 = vshrl.u32 %v2017, 7
      %v2019 = vsub.s32 6, %v2018
      %v2020 = vrot.slane %v564, %v2019
      %v2021 = vlaneseq
      %v2022 = vshrl.u32 %v2021, 7
      %v2023 = vsub.s32 6, %v2022
      %v2024 = vrot.slane %v566, %v2023
      %v2025 = vlaneseq
      %v2026 = vshrl.u32 %v2025, 7
      %v2027 = vsub.s32 6, %v2026
      %v2028 = vrot.slane %v568, %v2027
      %v2029 = vlaneseq
      %v2030 = vshrl.u32 %v2029, 7
      %v2031 = vsub.s32 6, %v2030
      %v2032 = vrot.slane %v570, %v2031
      %v2033 = vlaneseq
      %v2034 = vshrl.u32 %v2033, 7
      %v2035 = vsub.s32 6, %v2034
      %v2036 = vrot.slane %v572, %v2035
      %v2037 = vlaneseq
      %v2038 = vshrl.u32 %v2037, 7
      %v2039 = vsub.s32 6, %v2038
      %v2040 = vrot.slane %v574, %v2039
      %v2041 = vlaneseq
      %v2042 = vshrl.u32 %v2041, 7
      %v2043 = vsub.s32 6, %v2042
      %v2044 = vrot.slane %v576, %v2043
      %v2045 = vlaneseq
      %v2046 = vshrl.u32 %v2045, 7
      %v2047 = vsub.s32 6, %v2046
      %v2048 = vrot.slane %v578, %v2047
      %v2049 = vlaneseq
      %v2050 = vshrl.u32 %v2049, 7
      %v2051 = vsub.s32 6, %v2050
      %v2052 = vrot.slane %v580, %v2051
      %v2053 = vlaneseq
      %v2054 = vshrl.u32 %v2053, 7
      %v2055 = vsub.s32 6, %v2054
      %v2056 = vrot.slane %v582, %v2055
      %v2057 = vlaneseq
      %v2058 = vshrl.u32 %v2057, 7
      %v2059 = vsub.s32 6, %v2058
      %v2060 = vrot.slane %v584, %v2059
      %v2061 = vlaneseq
      %v2062 = vshrl.u32 %v2061, 7
      %v2063 = vsub.s32 6, %v2062
      %v2064 = vrot.slane %v586, %v2063
      %v2065 = vlaneseq
      %v2066 = vshrl.u32 %v2065, 7
      %v2067 = vsub.s32 6, %v2066
      %v2068 = vrot.slane %v588, %v2067
      %v2069 = vlaneseq
      %v2070 = vshrl.u32 %v2069, 7
      %v2071 = vsub.s32 6, %v2070
      %v2072 = vrot.slane %v590, %v2071
      %v2073 = vlaneseq
      %v2074 = vshrl.u32 %v2073, 7
      %v2075 = vsub.s32 6, %v2074
      %v2076 = vrot.slane %v592, %v2075
      %v2077 = vlaneseq
      %v2078 = vshrl.u32 %v2077, 7
      %v2079 = vsub.s32 6, %v2078
      %v2080 = vrot.slane %v594, %v2079
      %v2081 = vlaneseq
      %v2082 = vshrl.u32 %v2081, 7
      %v2083 = vsub.s32 6, %v2082
      %v2084 = vrot.slane %v596, %v2083
      %v2085 = vlaneseq
      %v2086 = vshrl.u32 %v2085, 7
      %v2087 = vsub.s32 6, %v2086
      %v2088 = vrot.slane %v598, %v2087
      %v2089 = vlaneseq
      %v2090 = vshrl.u32 %v2089, 7
      %v2091 = vsub.s32 6, %v2090
      %v2092 = vrot.slane %v600, %v2091
      %v2093 = vlaneseq
      %v2094 = vshrl.u32 %v2093, 7
      %v2095 = vsub.s32 6, %v2094
      %v2096 = vrot.slane %v602, %v2095
      %v2097 = vlaneseq
      %v2098 = vshrl.u32 %v2097, 7
      %v2099 = vsub.s32 6, %v2098
      %v2100 = vrot.slane %v604, %v2099
      %v2101 = vlaneseq
      %v2102 = vshrl.u32 %v2101, 7
      %v2103 = vsub.s32 6, %v2102
      %v2104 = vrot.slane %v606, %v2103
      %v2105 = vlaneseq
      %v2106 = vshrl.u32 %v2105, 7
      %v2107 = vsub.s32 6, %v2106
      %v2108 = vrot.slane %v608, %v2107
      %v2109 = vlaneseq
      %v2110 = vshrl.u32 %v2109, 7
      %v2111 = vsub.s32 6, %v2110
      %v2112 = vrot.slane %v610, %v2111
      %v2113 = vmul.f32 %v1983, %v1988
      %v2114 = vmul.f32 %v1983, %v1992
      %v2115 = vmul.f32 %v1983, %v1996
      %v2116 = vmul.f32 %v1983, %v2000
      %v2117 = vmul.f32 %v1983, %v2004
      %v2118 = vmul.f32 %v1983, %v2008
      %v2119 = vmul.f32 %v1983, %v2012
      %v2120 = vmul.f32 %v1983, %v2016
      %v2121 = vmul.f32 %v1983, %v2020
      %v2122 = vmul.f32 %v1983, %v2024
      %v2123 = vmul.f32 %v1983, %v2028
      %v2124 = vmul.f32 %v1983, %v2032
      %v2125 = vmul.f32 %v1983, %v2036
      %v2126 = vmul.f32 %v1983, %v2040
      %v2127 = vmul.f32 %v1983, %v2044
      %v2128 = vmul.f32 %v1983, %v2048
      %v2129 = vmul.f32 %v1983, %v2052
      %v2130 = vmul.f32 %v1983, %v2056
      %v2131 = vmul.f32 %v1983, %v2060
      %v2132 = vmul.f32 %v1983, %v2064
      %v2133 = vmul.f32 %v1983, %v2068
      %v2134 = vmul.f32 %v1983, %v2072
      %v2135 = vmul.f32 %v1983, %v2076
      %v2136 = vmul.f32 %v1983, %v2080
      %v2137 = vmul.f32 %v1983, %v2084
      %v2138 = vmul.f32 %v1983, %v2088
      %v2139 = vmul.f32 %v1983, %v2092
      %v2140 = vmul.f32 %v1983, %v2096
      %v2141 = vmul.f32 %v1983, %v2100
      %v2142 = vmul.f32 %v1983, %v2104
      %v2143 = vmul.f32 %v1983, %v2108
      %v2144 = vmul.f32 %v1983, %v2112
      %v2145 = vadd.f32 %v1949, %v2113
      %v2146 = vadd.f32 %v1950, %v2114
      %v2147 = vadd.f32 %v1951, %v2115
      %v2148 = vadd.f32 %v1952, %v2116
      %v2149 = vadd.f32 %v1953, %v2117
      %v2150 = vadd.f32 %v1954, %v2118
      %v2151 = vadd.f32 %v1955, %v2119
      %v2152 = vadd.f32 %v1956, %v2120
      %v2153 = vadd.f32 %v1957, %v2121
      %v2154 = vadd.f32 %v1958, %v2122
      %v2155 = vadd.f32 %v1959, %v2123
      %v2156 = vadd.f32 %v1960, %v2124
      %v2157 = vadd.f32 %v1961, %v2125
      %v2158 = vadd.f32 %v1962, %v2126
      %v2159 = vadd.f32 %v1963, %v2127
      %v2160 = vadd.f32 %v1964, %v2128
      %v2161 = vadd.f32 %v1965, %v2129
      %v2162 = vadd.f32 %v1966, %v2130
      %v2163 = vadd.f32 %v1967, %v2131
      %v2164 = vadd.f32 %v1968, %v2132
      %v2165 = vadd.f32 %v1969, %v2133
      %v2166 = vadd.f32 %v1970, %v2134
      %v2167 = vadd.f32 %v1971, %v2135
      %v2168 = vadd.f32 %v1972, %v2136
      %v2169 = vadd.f32 %v1973, %v2137
      %v2170 = vadd.f32 %v1974, %v2138
      %v2171 = vadd.f32 %v1975, %v2139
      %v2172 = vadd.f32 %v1976, %v2140
      %v2173 = vadd.f32 %v1977, %v2141
      %v2174 = vadd.f32 %v1978, %v2142
      %v2175 = vadd.f32 %v1979, %v2143
      %v2176 = vadd.f32 %v1980, %v2144
      %2177 = vset.pattern.permute.xlu0 7
      %2178 = vperm.xlu0 %2177, %v835
      %v2179 = vpop.permute.xlu0 %2178
      %v2181 = vlaneseq
      %v2182 = vshrl.u32 %v2181, 7
      %v2183 = vsub.s32 7, %v2182
      %v2184 = vrot.slane %v548, %v2183
      %v2185 = vlaneseq
      %v2186 = vshrl.u32 %v2185, 7
      %v2187 = vsub.s32 7, %v2186
      %v2188 = vrot.slane %v550, %v2187
      %v2189 = vlaneseq
      %v2190 = vshrl.u32 %v2189, 7
      %v2191 = vsub.s32 7, %v2190
      %v2192 = vrot.slane %v552, %v2191
      %v2193 = vlaneseq
      %v2194 = vshrl.u32 %v2193, 7
      %v2195 = vsub.s32 7, %v2194
      %v2196 = vrot.slane %v554, %v2195
      %v2197 = vlaneseq
      %v2198 = vshrl.u32 %v2197, 7
      %v2199 = vsub.s32 7, %v2198
      %v2200 = vrot.slane %v556, %v2199
      %v2201 = vlaneseq
      %v2202 = vshrl.u32 %v2201, 7
      %v2203 = vsub.s32 7, %v2202
      %v2204 = vrot.slane %v558, %v2203
      %v2205 = vlaneseq
      %v2206 = vshrl.u32 %v2205, 7
      %v2207 = vsub.s32 7, %v2206
      %v2208 = vrot.slane %v560, %v2207
      %v2209 = vlaneseq
      %v2210 = vshrl.u32 %v2209, 7
      %v2211 = vsub.s32 7, %v2210
      %v2212 = vrot.slane %v562, %v2211
      %v2213 = vlaneseq
      %v2214 = vshrl.u32 %v2213, 7
      %v2215 = vsub.s32 7, %v2214
      %v2216 = vrot.slane %v564, %v2215
      %v2217 = vlaneseq
      %v2218 = vshrl.u32 %v2217, 7
      %v2219 = vsub.s32 7, %v2218
      %v2220 = vrot.slane %v566, %v2219
      %v2221 = vlaneseq
      %v2222 = vshrl.u32 %v2221, 7
      %v2223 = vsub.s32 7, %v2222
      %v2224 = vrot.slane %v568, %v2223
      %v2225 = vlaneseq
      %v2226 = vshrl.u32 %v2225, 7
      %v2227 = vsub.s32 7, %v2226
      %v2228 = vrot.slane %v570, %v2227
      %v2229 = vlaneseq
      %v2230 = vshrl.u32 %v2229, 7
      %v2231 = vsub.s32 7, %v2230
      %v2232 = vrot.slane %v572, %v2231
      %v2233 = vlaneseq
      %v2234 = vshrl.u32 %v2233, 7
      %v2235 = vsub.s32 7, %v2234
      %v2236 = vrot.slane %v574, %v2235
      %v2237 = vlaneseq
      %v2238 = vshrl.u32 %v2237, 7
      %v2239 = vsub.s32 7, %v2238
      %v2240 = vrot.slane %v576, %v2239
      %v2241 = vlaneseq
      %v2242 = vshrl.u32 %v2241, 7
      %v2243 = vsub.s32 7, %v2242
      %v2244 = vrot.slane %v578, %v2243
      %v2245 = vlaneseq
      %v2246 = vshrl.u32 %v2245, 7
      %v2247 = vsub.s32 7, %v2246
      %v2248 = vrot.slane %v580, %v2247
      %v2249 = vlaneseq
      %v2250 = vshrl.u32 %v2249, 7
      %v2251 = vsub.s32 7, %v2250
      %v2252 = vrot.slane %v582, %v2251
      %v2253 = vlaneseq
      %v2254 = vshrl.u32 %v2253, 7
      %v2255 = vsub.s32 7, %v2254
      %v2256 = vrot.slane %v584, %v2255
      %v2257 = vlaneseq
      %v2258 = vshrl.u32 %v2257, 7
      %v2259 = vsub.s32 7, %v2258
      %v2260 = vrot.slane %v586, %v2259
      %v2261 = vlaneseq
      %v2262 = vshrl.u32 %v2261, 7
      %v2263 = vsub.s32 7, %v2262
      %v2264 = vrot.slane %v588, %v2263
      %v2265 = vlaneseq
      %v2266 = vshrl.u32 %v2265, 7
      %v2267 = vsub.s32 7, %v2266
      %v2268 = vrot.slane %v590, %v2267
      %v2269 = vlaneseq
      %v2270 = vshrl.u32 %v2269, 7
      %v2271 = vsub.s32 7, %v2270
      %v2272 = vrot.slane %v592, %v2271
      %v2273 = vlaneseq
      %v2274 = vshrl.u32 %v2273, 7
      %v2275 = vsub.s32 7, %v2274
      %v2276 = vrot.slane %v594, %v2275
      %v2277 = vlaneseq
      %v2278 = vshrl.u32 %v2277, 7
      %v2279 = vsub.s32 7, %v2278
      %v2280 = vrot.slane %v596, %v2279
      %v2281 = vlaneseq
      %v2282 = vshrl.u32 %v2281, 7
      %v2283 = vsub.s32 7, %v2282
      %v2284 = vrot.slane %v598, %v2283
      %v2285 = vlaneseq
      %v2286 = vshrl.u32 %v2285, 7
      %v2287 = vsub.s32 7, %v2286
      %v2288 = vrot.slane %v600, %v2287
      %v2289 = vlaneseq
      %v2290 = vshrl.u32 %v2289, 7
      %v2291 = vsub.s32 7, %v2290
      %v2292 = vrot.slane %v602, %v2291
      %v2293 = vlaneseq
      %v2294 = vshrl.u32 %v2293, 7
      %v2295 = vsub.s32 7, %v2294
      %v2296 = vrot.slane %v604, %v2295
      %v2297 = vlaneseq
      %v2298 = vshrl.u32 %v2297, 7
      %v2299 = vsub.s32 7, %v2298
      %v2300 = vrot.slane %v606, %v2299
      %v2301 = vlaneseq
      %v2302 = vshrl.u32 %v2301, 7
      %v2303 = vsub.s32 7, %v2302
      %v2304 = vrot.slane %v608, %v2303
      %v2305 = vlaneseq
      %v2306 = vshrl.u32 %v2305, 7
      %v2307 = vsub.s32 7, %v2306
      %v2308 = vrot.slane %v610, %v2307
      %v2309 = vmul.f32 %v2179, %v2184
      %v2310 = vmul.f32 %v2179, %v2188
      %v2311 = vmul.f32 %v2179, %v2192
      %v2312 = vmul.f32 %v2179, %v2196
      %v2313 = vmul.f32 %v2179, %v2200
      %v2314 = vmul.f32 %v2179, %v2204
      %v2315 = vmul.f32 %v2179, %v2208
      %v2316 = vmul.f32 %v2179, %v2212
      %v2317 = vmul.f32 %v2179, %v2216
      %v2318 = vmul.f32 %v2179, %v2220
      %v2319 = vmul.f32 %v2179, %v2224
      %v2320 = vmul.f32 %v2179, %v2228
      %v2321 = vmul.f32 %v2179, %v2232
      %v2322 = vmul.f32 %v2179, %v2236
      %v2323 = vmul.f32 %v2179, %v2240
      %v2324 = vmul.f32 %v2179, %v2244
      %v2325 = vmul.f32 %v2179, %v2248
      %v2326 = vmul.f32 %v2179, %v2252
      %v2327 = vmul.f32 %v2179, %v2256
      %v2328 = vmul.f32 %v2179, %v2260
      %v2329 = vmul.f32 %v2179, %v2264
      %v2330 = vmul.f32 %v2179, %v2268
      %v2331 = vmul.f32 %v2179, %v2272
      %v2332 = vmul.f32 %v2179, %v2276
      %v2333 = vmul.f32 %v2179, %v2280
      %v2334 = vmul.f32 %v2179, %v2284
      %v2335 = vmul.f32 %v2179, %v2288
      %v2336 = vmul.f32 %v2179, %v2292
      %v2337 = vmul.f32 %v2179, %v2296
      %v2338 = vmul.f32 %v2179, %v2300
      %v2339 = vmul.f32 %v2179, %v2304
      %v2340 = vmul.f32 %v2179, %v2308
      %v2341 = vadd.f32 %v2145, %v2309
      %v2342 = vadd.f32 %v2146, %v2310
      %v2343 = vadd.f32 %v2147, %v2311
      %v2344 = vadd.f32 %v2148, %v2312
      %v2345 = vadd.f32 %v2149, %v2313
      %v2346 = vadd.f32 %v2150, %v2314
      %v2347 = vadd.f32 %v2151, %v2315
      %v2348 = vadd.f32 %v2152, %v2316
      %v2349 = vadd.f32 %v2153, %v2317
      %v2350 = vadd.f32 %v2154, %v2318
      %v2351 = vadd.f32 %v2155, %v2319
      %v2352 = vadd.f32 %v2156, %v2320
      %v2353 = vadd.f32 %v2157, %v2321
      %v2354 = vadd.f32 %v2158, %v2322
      %v2355 = vadd.f32 %v2159, %v2323
      %v2356 = vadd.f32 %v2160, %v2324
      %v2357 = vadd.f32 %v2161, %v2325
      %v2358 = vadd.f32 %v2162, %v2326
      %v2359 = vadd.f32 %v2163, %v2327
      %v2360 = vadd.f32 %v2164, %v2328
      %v2361 = vadd.f32 %v2165, %v2329
      %v2362 = vadd.f32 %v2166, %v2330
      %v2363 = vadd.f32 %v2167, %v2331
      %v2364 = vadd.f32 %v2168, %v2332
      %v2365 = vadd.f32 %v2169, %v2333
      %v2366 = vadd.f32 %v2170, %v2334
      %v2367 = vadd.f32 %v2171, %v2335
      %v2368 = vadd.f32 %v2172, %v2336
      %v2369 = vadd.f32 %v2173, %v2337
      %v2370 = vadd.f32 %v2174, %v2338
      %v2371 = vadd.f32 %v2175, %v2339
      %v2372 = vadd.f32 %v2176, %v2340
      %v2373 = vmul.f32 %v2341, %v803
      %v2374 = vmul.f32 %v2342, %v804
      %v2375 = vmul.f32 %v2343, %v805
      %v2376 = vmul.f32 %v2344, %v806
      %v2377 = vmul.f32 %v2345, %v807
      %v2378 = vmul.f32 %v2346, %v808
      %v2379 = vmul.f32 %v2347, %v809
      %v2380 = vmul.f32 %v2348, %v810
      %v2381 = vmul.f32 %v2349, %v811
      %v2382 = vmul.f32 %v2350, %v812
      %v2383 = vmul.f32 %v2351, %v813
      %v2384 = vmul.f32 %v2352, %v814
      %v2385 = vmul.f32 %v2353, %v815
      %v2386 = vmul.f32 %v2354, %v816
      %v2387 = vmul.f32 %v2355, %v817
      %v2388 = vmul.f32 %v2356, %v818
      %v2389 = vmul.f32 %v2357, %v819
      %v2390 = vmul.f32 %v2358, %v820
      %v2391 = vmul.f32 %v2359, %v821
      %v2392 = vmul.f32 %v2360, %v822
      %v2393 = vmul.f32 %v2361, %v823
      %v2394 = vmul.f32 %v2362, %v824
      %v2395 = vmul.f32 %v2363, %v825
      %v2396 = vmul.f32 %v2364, %v826
      %v2397 = vmul.f32 %v2365, %v827
      %v2398 = vmul.f32 %v2366, %v828
      %v2399 = vmul.f32 %v2367, %v829
      %v2400 = vmul.f32 %v2368, %v830
      %v2401 = vmul.f32 %v2369, %v831
      %v2402 = vmul.f32 %v2370, %v832
      %v2403 = vmul.f32 %v2371, %v833
      %v2404 = vmul.f32 %v2372, %v834
      %v2405 = vpack.c.bf16 %v2373, %v2373
      %v2406 = vpack.c.bf16 %v2374, %v2374
      %v2407 = vpack.c.bf16 %v2375, %v2375
      %v2408 = vpack.c.bf16 %v2376, %v2376
      %v2409 = vpack.c.bf16 %v2377, %v2377
      %v2410 = vpack.c.bf16 %v2378, %v2378
      %v2411 = vpack.c.bf16 %v2379, %v2379
      %v2412 = vpack.c.bf16 %v2380, %v2380
      %v2413 = vpack.c.bf16 %v2381, %v2381
      %v2414 = vpack.c.bf16 %v2382, %v2382
      %v2415 = vpack.c.bf16 %v2383, %v2383
      %v2416 = vpack.c.bf16 %v2384, %v2384
      %v2417 = vpack.c.bf16 %v2385, %v2385
      %v2418 = vpack.c.bf16 %v2386, %v2386
      %v2419 = vpack.c.bf16 %v2387, %v2387
      %v2420 = vpack.c.bf16 %v2388, %v2388
      %v2421 = vpack.c.bf16 %v2389, %v2389
      %v2422 = vpack.c.bf16 %v2390, %v2390
      %v2423 = vpack.c.bf16 %v2391, %v2391
      %v2424 = vpack.c.bf16 %v2392, %v2392
      %v2425 = vpack.c.bf16 %v2393, %v2393
      %v2426 = vpack.c.bf16 %v2394, %v2394
      %v2427 = vpack.c.bf16 %v2395, %v2395
      %v2428 = vpack.c.bf16 %v2396, %v2396
      %v2429 = vpack.c.bf16 %v2397, %v2397
      %v2430 = vpack.c.bf16 %v2398, %v2398
      %v2431 = vpack.c.bf16 %v2399, %v2399
      %v2432 = vpack.c.bf16 %v2400, %v2400
      %v2433 = vpack.c.bf16 %v2401, %v2401
      %v2434 = vpack.c.bf16 %v2402, %v2402
      %v2435 = vpack.c.bf16 %v2403, %v2403
      %v2436 = vpack.c.bf16 %v2404, %v2404
      %v2469 = vcombine.low %v2405, %v2406
      %v2470 = vcombine.low %v2407, %v2408
      %v2472 = vunpack.c.l.s4 1983009808
      %v2473 = vunpack.c.0.s8 %v2472
      %v2474 = vlaneseq
      %v2475 = vshrl.u32 %v2474, 7
      %v2476 = vsub.s32 %v2473, %v2475
      %v2477 = vrot.slane %v2469, %v2476
      %v2479 = vunpack.c.l.s4 1983009808
      %v2480 = vunpack.c.0.s8 %v2479
      %v2481 = vlaneseq
      %v2482 = vshrl.u32 %v2481, 7
      %v2483 = vsub.s32 %v2480, %v2482
      %v2484 = vrot.slane %v2470, %v2483
      %v2485 = vcombine.low %v2477, %v2484
      %v2486 = vcombine.low %v2409, %v2410
      %v2487 = vcombine.low %v2411, %v2412
      %v2489 = vunpack.c.l.s4 1983009808
      %v2490 = vunpack.c.0.s8 %v2489
      %v2491 = vlaneseq
      %v2492 = vshrl.u32 %v2491, 7
      %v2493 = vsub.s32 %v2490, %v2492
      %v2494 = vrot.slane %v2486, %v2493
      %v2496 = vunpack.c.l.s4 1983009808
      %v2497 = vunpack.c.0.s8 %v2496
      %v2498 = vlaneseq
      %v2499 = vshrl.u32 %v2498, 7
      %v2500 = vsub.s32 %v2497, %v2499
      %v2501 = vrot.slane %v2487, %v2500
      %v2502 = vcombine.low %v2494, %v2501
      %v2503 = vcombine.low %v2413, %v2414
      %v2504 = vcombine.low %v2415, %v2416
      %v2506 = vunpack.c.l.s4 1983009808
      %v2507 = vunpack.c.0.s8 %v2506
      %v2508 = vlaneseq
      %v2509 = vshrl.u32 %v2508, 7
      %v2510 = vsub.s32 %v2507, %v2509
      %v2511 = vrot.slane %v2503, %v2510
      %v2513 = vunpack.c.l.s4 1983009808
      %v2514 = vunpack.c.0.s8 %v2513
      %v2515 = vlaneseq
      %v2516 = vshrl.u32 %v2515, 7
      %v2517 = vsub.s32 %v2514, %v2516
      %v2518 = vrot.slane %v2504, %v2517
      %v2519 = vcombine.low %v2511, %v2518
      %v2520 = vcombine.low %v2417, %v2418
      %v2521 = vcombine.low %v2419, %v2420
      %v2523 = vunpack.c.l.s4 1983009808
      %v2524 = vunpack.c.0.s8 %v2523
      %v2525 = vlaneseq
      %v2526 = vshrl.u32 %v2525, 7
      %v2527 = vsub.s32 %v2524, %v2526
      %v2528 = vrot.slane %v2520, %v2527
      %v2530 = vunpack.c.l.s4 1983009808
      %v2531 = vunpack.c.0.s8 %v2530
      %v2532 = vlaneseq
      %v2533 = vshrl.u32 %v2532, 7
      %v2534 = vsub.s32 %v2531, %v2533
      %v2535 = vrot.slane %v2521, %v2534
      %v2536 = vcombine.low %v2528, %v2535
      %v2537 = vcombine.low %v2421, %v2422
      %v2538 = vcombine.low %v2423, %v2424
      %v2540 = vunpack.c.l.s4 1983009808
      %v2541 = vunpack.c.0.s8 %v2540
      %v2542 = vlaneseq
      %v2543 = vshrl.u32 %v2542, 7
      %v2544 = vsub.s32 %v2541, %v2543
      %v2545 = vrot.slane %v2537, %v2544
      %v2547 = vunpack.c.l.s4 1983009808
      %v2548 = vunpack.c.0.s8 %v2547
      %v2549 = vlaneseq
      %v2550 = vshrl.u32 %v2549, 7
      %v2551 = vsub.s32 %v2548, %v2550
      %v2552 = vrot.slane %v2538, %v2551
      %v2553 = vcombine.low %v2545, %v2552
      %v2554 = vcombine.low %v2425, %v2426
      %v2555 = vcombine.low %v2427, %v2428
      %v2557 = vunpack.c.l.s4 1983009808
      %v2558 = vunpack.c.0.s8 %v2557
      %v2559 = vlaneseq
      %v2560 = vshrl.u32 %v2559, 7
      %v2561 = vsub.s32 %v2558, %v2560
      %v2562 = vrot.slane %v2554, %v2561
      %v2564 = vunpack.c.l.s4 1983009808
      %v2565 = vunpack.c.0.s8 %v2564
      %v2566 = vlaneseq
      %v2567 = vshrl.u32 %v2566, 7
      %v2568 = vsub.s32 %v2565, %v2567
      %v2569 = vrot.slane %v2555, %v2568
      %v2570 = vcombine.low %v2562, %v2569
      %v2571 = vcombine.low %v2429, %v2430
      %v2572 = vcombine.low %v2431, %v2432
      %v2574 = vunpack.c.l.s4 1983009808
      %v2575 = vunpack.c.0.s8 %v2574
      %v2576 = vlaneseq
      %v2577 = vshrl.u32 %v2576, 7
      %v2578 = vsub.s32 %v2575, %v2577
      %v2579 = vrot.slane %v2571, %v2578
      %v2581 = vunpack.c.l.s4 1983009808
      %v2582 = vunpack.c.0.s8 %v2581
      %v2583 = vlaneseq
      %v2584 = vshrl.u32 %v2583, 7
      %v2585 = vsub.s32 %v2582, %v2584
      %v2586 = vrot.slane %v2572, %v2585
      %v2587 = vcombine.low %v2579, %v2586
      %v2588 = vcombine.low %v2433, %v2434
      %v2589 = vcombine.low %v2435, %v2436
      %v2591 = vunpack.c.l.s4 1983009808
      %v2592 = vunpack.c.0.s8 %v2591
      %v2593 = vlaneseq
      %v2594 = vshrl.u32 %v2593, 7
      %v2595 = vsub.s32 %v2592, %v2594
      %v2596 = vrot.slane %v2588, %v2595
      %v2598 = vunpack.c.l.s4 1983009808
      %v2599 = vunpack.c.0.s8 %v2598
      %v2600 = vlaneseq
      %v2601 = vshrl.u32 %v2600, 7
      %v2602 = vsub.s32 %v2599, %v2601
      %v2603 = vrot.slane %v2589, %v2602
      %v2604 = vcombine.low %v2596, %v2603
      %2613 = vst [vmem:[%s275] sm:$0xff] %v2485
      %2614 = vst [vmem:[%s275 + $0x8] sm:$0xff] %v2502
      %2615 = vst [vmem:[%s275 + $0x10] sm:$0xff] %v2519
      %2616 = vst [vmem:[%s275 + $0x18] sm:$0xff] %v2536
      %2617 = vst [vmem:[%s275 + $0x20] sm:$0xff] %v2553
      %2618 = vst [vmem:[%s275 + $0x28] sm:$0xff] %v2570
      %2619 = vst [vmem:[%s275 + $0x30] sm:$0xff] %v2587
      %2620 = vst [vmem:[%s275 + $0x38] sm:$0xff] %v2604
      %vm2621 = vcmask 1043456
      %v2622 = vsel %vm2621, %v2373, 0.0
      %v2623 = vsel %vm2621, %v2374, 0.0
      %v2624 = vadd.f32 %v2622, %v2623
      %v2625 = vsel %vm2621, %v2375, 0.0
      %v2626 = vadd.f32 %v2624, %v2625
      %v2627 = vsel %vm2621, %v2376, 0.0
      %v2628 = vadd.f32 %v2626, %v2627
      %v2629 = vsel %vm2621, %v2377, 0.0
      %v2630 = vadd.f32 %v2628, %v2629
      %v2631 = vsel %vm2621, %v2378, 0.0
      %v2632 = vadd.f32 %v2630, %v2631
      %v2633 = vsel %vm2621, %v2379, 0.0
      %v2634 = vadd.f32 %v2632, %v2633
      %v2635 = vsel %vm2621, %v2380, 0.0
      %v2636 = vadd.f32 %v2634, %v2635
      %v2637 = vsel %vm2621, %v2381, 0.0
      %v2638 = vadd.f32 %v2636, %v2637
      %v2639 = vsel %vm2621, %v2382, 0.0
      %v2640 = vadd.f32 %v2638, %v2639
      %v2641 = vsel %vm2621, %v2383, 0.0
      %v2642 = vadd.f32 %v2640, %v2641
      %v2643 = vsel %vm2621, %v2384, 0.0
      %v2644 = vadd.f32 %v2642, %v2643
      %v2645 = vsel %vm2621, %v2385, 0.0
      %v2646 = vadd.f32 %v2644, %v2645
      %v2647 = vsel %vm2621, %v2386, 0.0
      %v2648 = vadd.f32 %v2646, %v2647
      %v2649 = vsel %vm2621, %v2387, 0.0
      %v2650 = vadd.f32 %v2648, %v2649
      %v2651 = vsel %vm2621, %v2388, 0.0
      %v2652 = vadd.f32 %v2650, %v2651
      %v2653 = vsel %vm2621, %v2389, 0.0
      %v2654 = vadd.f32 %v2652, %v2653
      %v2655 = vsel %vm2621, %v2390, 0.0
      %v2656 = vadd.f32 %v2654, %v2655
      %v2657 = vsel %vm2621, %v2391, 0.0
      %v2658 = vadd.f32 %v2656, %v2657
      %v2659 = vsel %vm2621, %v2392, 0.0
      %v2660 = vadd.f32 %v2658, %v2659
      %v2661 = vsel %vm2621, %v2393, 0.0
      %v2662 = vadd.f32 %v2660, %v2661
      %v2663 = vsel %vm2621, %v2394, 0.0
      %v2664 = vadd.f32 %v2662, %v2663
      %v2665 = vsel %vm2621, %v2395, 0.0
      %v2666 = vadd.f32 %v2664, %v2665
      %v2667 = vsel %vm2621, %v2396, 0.0
      %v2668 = vadd.f32 %v2666, %v2667
      %v2669 = vsel %vm2621, %v2397, 0.0
      %v2670 = vadd.f32 %v2668, %v2669
      %v2671 = vsel %vm2621, %v2398, 0.0
      %v2672 = vadd.f32 %v2670, %v2671
      %v2673 = vsel %vm2621, %v2399, 0.0
      %v2674 = vadd.f32 %v2672, %v2673
      %v2675 = vsel %vm2621, %v2400, 0.0
      %v2676 = vadd.f32 %v2674, %v2675
      %v2677 = vsel %vm2621, %v2401, 0.0
      %v2678 = vadd.f32 %v2676, %v2677
      %v2679 = vsel %vm2621, %v2402, 0.0
      %v2680 = vadd.f32 %v2678, %v2679
      %v2681 = vsel %vm2621, %v2403, 0.0
      %v2682 = vadd.f32 %v2680, %v2681
      %v2683 = vsel %vm2621, %v2404, 0.0
      %v2684 = vadd.f32 %v2682, %v2683
      %2685 = vadd.xlane.f32.xlu0 %v2684
      %v2686 = vpop.xlane.xlu0 %2685
      %vm2687 = vcmask 3072
      %2688 = vst.msk [vmem:[%s283] sm:$0xf] %vm2687, %v2686
      %v2689 = vmul.f32 %v2373, %v2373
      %v2690 = vmul.f32 %v2374, %v2374
      %v2691 = vmul.f32 %v2375, %v2375
      %v2692 = vmul.f32 %v2376, %v2376
      %v2693 = vmul.f32 %v2377, %v2377
      %v2694 = vmul.f32 %v2378, %v2378
      %v2695 = vmul.f32 %v2379, %v2379
      %v2696 = vmul.f32 %v2380, %v2380
      %v2697 = vmul.f32 %v2381, %v2381
      %v2698 = vmul.f32 %v2382, %v2382
      %v2699 = vmul.f32 %v2383, %v2383
      %v2700 = vmul.f32 %v2384, %v2384
      %v2701 = vmul.f32 %v2385, %v2385
      %v2702 = vmul.f32 %v2386, %v2386
      %v2703 = vmul.f32 %v2387, %v2387
      %v2704 = vmul.f32 %v2388, %v2388
      %v2705 = vmul.f32 %v2389, %v2389
      %v2706 = vmul.f32 %v2390, %v2390
      %v2707 = vmul.f32 %v2391, %v2391
      %v2708 = vmul.f32 %v2392, %v2392
      %v2709 = vmul.f32 %v2393, %v2393
      %v2710 = vmul.f32 %v2394, %v2394
      %v2711 = vmul.f32 %v2395, %v2395
      %v2712 = vmul.f32 %v2396, %v2396
      %v2713 = vmul.f32 %v2397, %v2397
      %v2714 = vmul.f32 %v2398, %v2398
      %v2715 = vmul.f32 %v2399, %v2399
      %v2716 = vmul.f32 %v2400, %v2400
      %v2717 = vmul.f32 %v2401, %v2401
      %v2718 = vmul.f32 %v2402, %v2402
      %v2719 = vmul.f32 %v2403, %v2403
      %v2720 = vmul.f32 %v2404, %v2404
      %v2721 = vsel %vm2621, %v2689, 0.0
      %v2722 = vsel %vm2621, %v2690, 0.0
      %v2723 = vadd.f32 %v2721, %v2722
      %v2724 = vsel %vm2621, %v2691, 0.0
      %v2725 = vadd.f32 %v2723, %v2724
      %v2726 = vsel %vm2621, %v2692, 0.0
      %v2727 = vadd.f32 %v2725, %v2726
      %v2728 = vsel %vm2621, %v2693, 0.0
      %v2729 = vadd.f32 %v2727, %v2728
      %v2730 = vsel %vm2621, %v2694, 0.0
      %v2731 = vadd.f32 %v2729, %v2730
      %v2732 = vsel %vm2621, %v2695, 0.0
      %v2733 = vadd.f32 %v2731, %v2732
      %v2734 = vsel %vm2621, %v2696, 0.0
      %v2735 = vadd.f32 %v2733, %v2734
      %v2736 = vsel %vm2621, %v2697, 0.0
      %v2737 = vadd.f32 %v2735, %v2736
      %v2738 = vsel %vm2621, %v2698, 0.0
      %v2739 = vadd.f32 %v2737, %v2738
      %v2740 = vsel %vm2621, %v2699, 0.0
      %v2741 = vadd.f32 %v2739, %v2740
      %v2742 = vsel %vm2621, %v2700, 0.0
      %v2743 = vadd.f32 %v2741, %v2742
      %v2744 = vsel %vm2621, %v2701, 0.0
      %v2745 = vadd.f32 %v2743, %v2744
      %v2746 = vsel %vm2621, %v2702, 0.0
      %v2747 = vadd.f32 %v2745, %v2746
      %v2748 = vsel %vm2621, %v2703, 0.0
      %v2749 = vadd.f32 %v2747, %v2748
      %v2750 = vsel %vm2621, %v2704, 0.0
      %v2751 = vadd.f32 %v2749, %v2750
      %v2752 = vsel %vm2621, %v2705, 0.0
      %v2753 = vadd.f32 %v2751, %v2752
      %v2754 = vsel %vm2621, %v2706, 0.0
      %v2755 = vadd.f32 %v2753, %v2754
      %v2756 = vsel %vm2621, %v2707, 0.0
      %v2757 = vadd.f32 %v2755, %v2756
      %v2758 = vsel %vm2621, %v2708, 0.0
      %v2759 = vadd.f32 %v2757, %v2758
      %v2760 = vsel %vm2621, %v2709, 0.0
      %v2761 = vadd.f32 %v2759, %v2760
      %v2762 = vsel %vm2621, %v2710, 0.0
      %v2763 = vadd.f32 %v2761, %v2762
      %v2764 = vsel %vm2621, %v2711, 0.0
      %v2765 = vadd.f32 %v2763, %v2764
      %v2766 = vsel %vm2621, %v2712, 0.0
      %v2767 = vadd.f32 %v2765, %v2766
      %v2768 = vsel %vm2621, %v2713, 0.0
      %v2769 = vadd.f32 %v2767, %v2768
      %v2770 = vsel %vm2621, %v2714, 0.0
      %v2771 = vadd.f32 %v2769, %v2770
      %v2772 = vsel %vm2621, %v2715, 0.0
      %v2773 = vadd.f32 %v2771, %v2772
      %v2774 = vsel %vm2621, %v2716, 0.0
      %v2775 = vadd.f32 %v2773, %v2774
      %v2776 = vsel %vm2621, %v2717, 0.0
      %v2777 = vadd.f32 %v2775, %v2776
      %v2778 = vsel %vm2621, %v2718, 0.0
      %v2779 = vadd.f32 %v2777, %v2778
      %v2780 = vsel %vm2621, %v2719, 0.0
      %v2781 = vadd.f32 %v2779, %v2780
      %v2782 = vsel %vm2621, %v2720, 0.0
      %v2783 = vadd.f32 %v2781, %v2782
      %2784 = vadd.xlane.f32.xlu0 %v2783
      %v2785 = vpop.xlane.xlu0 %2784
      %2786 = vst.msk [vmem:[%s290] sm:$0xf] %vm2687, %v2785
      %s2787 = smul.u32 32, %s21
      %p2788 = scmp.lt.s32.totalorder %s20, 1
      %s2789 = scalar_select %p2788, %s20, 1
      %p2790 = scmp.lt.s32.totalorder %s2787, 31
      %s2791 = scalar_select %p2790, %s2787, 31
      %s2792 = smul.addr %s2789, 32
      %s2793 = sadd.s32 %s2791, %s2792
      %s2794 = smul.addr %s2793, 2
      %s2795 = scalar_lea.vmem %s2, %s2794
      %p2796 = scmp.lt.s32.totalorder %s20, 1
      %s2797 = scalar_select %p2796, %s20, 1
      %p2798 = scmp.lt.s32.totalorder %s21, 0
      %s2799 = scalar_select %p2798, %s21, 0
      %s2800 = sadd.s32 %s2799, %s2797
      %s2801 = smul.addr %s2800, 4
      %s2802 = scalar_lea.vmem %s3, %s2801
      %p2803 = scmp.lt.s32.totalorder %s20, 1
      %s2804 = scalar_select %p2803, %s20, 1
      %p2805 = scmp.lt.s32.totalorder %s21, 0
      %s2806 = scalar_select %p2805, %s21, 0
      %s2807 = sadd.s32 %s2806, %s2804
      %s2808 = smul.addr %s2807, 4
      %s2809 = scalar_lea.vmem %s4, %s2808
      // Predicated region
      $region29: #{graph_to_featuremaps.2} parent=27 // pred_check
        %p2810 = pneg %p102
      $region30: #{graph_to_featuremaps.2} parent=27 // pred_check_branch
        %2812 = sbr.rel (%p2810) target = $region32
      $region31: #{graph_to_featuremaps.2} parent=27 // pred_region
        %s2813 = smul.u32 32, %s21
      $region32: #{graph_to_featuremaps.2} parent=27 // pred_fallthru
        _
      // Predicated region
      $region33: #{graph_to_featuremaps.2} parent=27 // pred_check
        %p2814 = pneg %p130
      $region34: #{graph_to_featuremaps.2} parent=27 // pred_check_branch
        %2816 = sbr.rel (%p2814) target = $region36
      $region35: #{graph_to_featuremaps.2} parent=27 // pred_region
        _
      $region36: #{graph_to_featuremaps.2} parent=27 // pred_fallthru
        _
      // Predicated region
      $region37: #{graph_to_featuremaps.2} parent=27 // pred_check
        %p2817 = pneg %p158
      $region38: #{graph_to_featuremaps.2} parent=27 // pred_check_branch
        %2819 = sbr.rel (%p2817) target = $region40
      $region39: #{graph_to_featuremaps.2} parent=27 // pred_region
        _
      $region40: #{graph_to_featuremaps.2} parent=27 // pred_fallthru
        _
    $region28: #{graph_to_featuremaps.2} parent=5 // pred_fallthru
      _
    %p2820 = scmp.le.s32.totalorder 2, %s11
    // Predicated region
    $region41: #{graph_to_featuremaps.2} parent=5 // pred_check
      %p2821 = pneg %p2820
    $region42: #{graph_to_featuremaps.2} parent=5 // pred_check_branch
      %2823 = sbr.rel (%p2821) target = $region44
    $region43: #{graph_to_featuremaps.2} parent=5 // pred_region
      %s2824 = ssub.s32 %s11, 2
      // Predicated region
      $region45: #{graph_to_featuremaps.2} parent=43 // pred_check
        %p2825 = pneg %p108
      $region46: #{graph_to_featuremaps.2} parent=43 // pred_check_branch
        %2827 = sbr.rel (%p2825) target = $region48
      $region47: #{graph_to_featuremaps.2} parent=43 // pred_region
        %s2828 = smul.u32 32, %s23
        %p2829 = scmp.lt.s32.totalorder %s22, 1
        %s2830 = scalar_select %p2829, %s22, 1
        %p2831 = scmp.lt.s32.totalorder %s2828, 31
        %s2832 = scalar_select %p2831, %s2828, 31
        %s2833 = smul.addr %s2830, 32
        %s2834 = sadd.s32 %s2832, %s2833
        %s2835 = smul.addr %s2834, 2
        %s2836 = scalar_lea.vmem %s2, %s2835
      $region48: #{graph_to_featuremaps.2} parent=43 // pred_fallthru
        _
      // Predicated region
      $region49: #{graph_to_featuremaps.2} parent=43 // pred_check
        %p2837 = pneg %p136
      $region50: #{graph_to_featuremaps.2} parent=43 // pred_check_branch
        %2839 = sbr.rel (%p2837) target = $region52
      $region51: #{graph_to_featuremaps.2} parent=43 // pred_region
        %p2840 = scmp.lt.s32.totalorder %s22, 1
        %s2841 = scalar_select %p2840, %s22, 1
        %p2842 = scmp.lt.s32.totalorder %s23, 0
        %s2843 = scalar_select %p2842, %s23, 0
        %s2844 = sadd.s32 %s2843, %s2841
        %s2845 = smul.addr %s2844, 4
        %s2846 = scalar_lea.vmem %s3, %s2845
      $region52: #{graph_to_featuremaps.2} parent=43 // pred_fallthru
        _
      // Predicated region
      $region53: #{graph_to_featuremaps.2} parent=43 // pred_check
        %p2847 = pneg %p164
      $region54: #{graph_to_featuremaps.2} parent=43 // pred_check_branch
        %2849 = sbr.rel (%p2847) target = $region56
      $region55: #{graph_to_featuremaps.2} parent=43 // pred_region
        %p2850 = scmp.lt.s32.totalorder %s22, 1
        %s2851 = scalar_select %p2850, %s22, 1
        %p2852 = scmp.lt.s32.totalorder %s23, 0
        %s2853 = scalar_select %p2852, %s23, 0
        %s2854 = sadd.s32 %s2853, %s2851
        %s2855 = smul.addr %s2854, 4
        %s2856 = scalar_lea.vmem %s4, %s2855
      $region56: #{graph_to_featuremaps.2} parent=43 // pred_fallthru
        _
    $region44: #{graph_to_featuremaps.2} parent=5 // pred_fallthru
      _
  $region6: #{graph_to_featuremaps.2} parent=0 // loop_footer
    %s15 = sadd.s32 1, %s11
  $region7: #{graph_to_featuremaps.2} parent=0 // loop_footer_branch
    %10 = sbr.rel target = $region3
  $region8: #{graph_to_featuremaps.2} parent=0 // loop_exit
    _

</llo_original>
